<compile_context>
chip_gen: v7x
topology: tpu7x:2x2x1
jax: 0.10.0
libtpu: 0.0.40
codegen_flags: <defaults>
</compile_context>

<pallas_src>
import functools

import jax
import jax.numpy as jnp
from jax.experimental import pallas as pl
from jax.experimental.pallas import tpu as pltpu

EPS = 1e-6


# ---------------------------------------------------------------------------
# Fused kernel: GroupNorm (two-pass stats) + QKV + attention + proj_out + res.
# ---------------------------------------------------------------------------
def fused_attn_kernel(x_ref, gamma_ref, beta_ref, gmat_ref,
                      wq_ref, bq_ref, wk_ref, bk_ref, wv_ref, bv_ref,
                      wp_ref, bp_ref, o_ref,
                      k_sc, v_sc, mean_sc, rstd_sc, *, eps):
    qi = pl.program_id(1)
    tq = o_ref.shape[1]
    c = o_ref.shape[2]

    # ---- once per batch (first q tile): GroupNorm stats + full K/V precompute
    @pl.when(qi == 0)
    def _():
        x = x_ref[0]                                            # (HW, C) f32
        gamma = gamma_ref[...]
        beta = beta_ref[...]
        gmat = gmat_ref[...]                                    # (C, C) group-mean matrix

        colsum = jnp.sum(x, axis=0, keepdims=True)              # (1, C)
        mean_c = jnp.dot(colsum, gmat,
                         preferred_element_type=jnp.float32)    # per-channel group mean
        xc = x - mean_c
        sqsum = jnp.sum(xc * xc, axis=0, keepdims=True)         # two-pass variance (no cancellation)
        var_c = jnp.dot(sqsum, gmat,
                        preferred_element_type=jnp.float32)     # biased var (torch GroupNorm)
        rstd_c = jax.lax.rsqrt(var_c + eps)
        mean_sc[...] = mean_c
        rstd_sc[...] = rstd_c

        xn = (xc * (rstd_c * gamma) + beta).astype(jnp.bfloat16)
        # Separate K / V matmuls keep the peak f32 intermediate at (HW, C).
        k_sc[...] = (jnp.dot(xn, wk_ref[...],
                             preferred_element_type=jnp.float32)
                     + bk_ref[...]).astype(jnp.bfloat16)
        v_sc[...] = (jnp.dot(xn, wv_ref[...],
                             preferred_element_type=jnp.float32)
                     + bv_ref[...]).astype(jnp.bfloat16)

    # ---- per q tile: normalize, project q, exact softmax vs resident K/V ----
    row0 = pl.multiple_of(qi * tq, tq)
    xq = x_ref[0, pl.ds(row0, tq), :]                           # (tq, C) f32 (residual + q source)
    xnq = ((xq - mean_sc[...]) * (rstd_sc[...] * gamma_ref[...])
           + beta_ref[...]).astype(jnp.bfloat16)
    q = (jnp.dot(xnq, wq_ref[...], preferred_element_type=jnp.float32)
         + bq_ref[...]).astype(jnp.bfloat16)                    # 1/sqrt(C) pre-folded into Wq/bq

    # s[i, j] = q_i . k_j : contract the channel dim of both (no transpose).
    s = jax.lax.dot_general(q, k_sc[...], (((1,), (1,)), ((), ())),
                            preferred_element_type=jnp.float32)  # (tq, HW) f32
    m = jnp.max(s, axis=-1, keepdims=True)
    p = jnp.exp(s - m)                                          # exact softmax: full KV resident
    l = jnp.sum(p, axis=-1, keepdims=True)
    pv = jnp.dot(p.astype(jnp.bfloat16), v_sc[...],
                 preferred_element_type=jnp.float32)             # (tq, C)
    h = pv * pl.reciprocal(l, approx=True)                       # EUP vrcp
    out = (jnp.dot(h.astype(jnp.bfloat16), wp_ref[...],
                   preferred_element_type=jnp.float32) + bp_ref[...])
    o_ref[0] = xq + out


# ---------------------------------------------------------------------------
# Wrapper helpers
# ---------------------------------------------------------------------------
def _pick_q_tile(hw, requested):
    if requested is not None:
        assert hw % requested == 0, "q_tile must divide H*W"
        return requested
    for t in (1024, 512, 256, 128):
        if hw % t == 0:
            return t
    # Odd HW: a single full-length q tile (block == full dim is always
    # layout-legal). Correctness over MXU efficiency for non-SD shapes.
    return hw


def _default_vmem_limit(hw, c, tq):
    """Rough footprint estimate, capped to ~75% of physical VMEM."""
    f32, bf16 = 4, 2
    resident = (2 * hw * c * f32          # double-buffered resident x block
                + 2 * hw * c * bf16       # K/V scratch
                + 2 * tq * c * f32        # double-buffered output blocks
                + 4 * c * c * bf16        # bf16 weights
                + c * c * f32             # group-mean matrix
                + 4 * c * f32)            # biases / gamma / beta
    transient = max(tq * hw * (f32 + bf16) + 3 * tq * c * f32,   # scores + probs
                    2 * hw * c * (f32 + bf16))                   # qi==0 K/V temps
    est = int((resident + transient) * 1.25)
    try:
        cap = int(pltpu.get_tpu_info().vmem_capacity_bytes) * 3 // 4
    except Exception:  # pragma: no cover - conservative fallback
        cap = 96 * 1024 * 1024
    return max(32 * 1024 * 1024, min(est, cap))


def prepack_params(params):
    """One-time weight prepack: bf16 casts + softmax scale folded into Wq/bq.

    Conv2d 1x1 weights are expected pre-transposed to (Cin, Cout)."""
    gamma, beta, wq, bq, wk, bk, wv, bv, wp, bp = params
    c = gamma.shape[-1]
    scale = float(c) ** -0.5
    f32 = jnp.float32
    return (gamma.reshape(1, c).astype(f32),
            beta.reshape(1, c).astype(f32),
            (wq * scale).astype(jnp.bfloat16),
            (bq * scale).reshape(1, c).astype(f32),
            wk.astype(jnp.bfloat16), bk.reshape(1, c).astype(f32),
            wv.astype(jnp.bfloat16), bv.reshape(1, c).astype(f32),
            wp.astype(jnp.bfloat16), bp.reshape(1, c).astype(f32))


def attn_block_pallas(x_nchw, packed_params, *, num_groups=32, q_tile=None,
                      vmem_limit_bytes=None):
    """x_nchw: (B, C, H, W) float32. packed_params from prepack_params()."""
    gamma, beta, wq_s, bq_s, wk, bk, wv, bv, wp, bp = packed_params
    b, c, hh, ww = x_nchw.shape
    hw = hh * ww
    assert c % num_groups == 0, "channels must be divisible by num_groups"
    cs = c // num_groups
    tq = _pick_q_tile(hw, q_tile)

    # NCHW -> (B, HW, C): spatial positions on sublanes, channels on lanes.
    x_seq = jnp.transpose(x_nchw.reshape(b, c, hw), (0, 2, 1)).astype(jnp.float32)

    # Group-mean broadcast matrix: gmat[i, j] = 1/(HW*Cs) if channels i, j share
    # a group, else 0, so (1, C)-row-sums @ gmat give per-channel group means.
    ch = jnp.arange(c)
    gmat = ((ch[:, None] // cs) == (ch[None, :] // cs)).astype(jnp.float32)
    gmat = gmat / float(hw * cs)

    if vmem_limit_bytes is None:
        vmem_limit_bytes = _default_vmem_limit(hw, c, tq)

    out_seq = pl.pallas_call(
        functools.partial(fused_attn_kernel, eps=EPS),
        out_shape=jax.ShapeDtypeStruct((b, hw, c), jnp.float32),
        grid_spec=pltpu.PrefetchScalarGridSpec(
            num_scalar_prefetch=0,
            grid=(b, hw // tq),
            in_specs=[
                # Full-sequence x block, resident across the q-tile axis
                # (same block index -> fetched once per batch).
                pl.BlockSpec((1, hw, c), lambda bi, qi: (bi, 0, 0)),
                pl.BlockSpec((1, c), lambda bi, qi: (0, 0)),          # gamma
                pl.BlockSpec((1, c), lambda bi, qi: (0, 0)),          # beta
                pl.BlockSpec((c, c), lambda bi, qi: (0, 0)),          # gmat
                pl.BlockSpec((c, c), lambda bi, qi: (0, 0)),          # Wq (scaled, bf16)
                pl.BlockSpec((1, c), lambda bi, qi: (0, 0)),          # bq (scaled)
                pl.BlockSpec((c, c), lambda bi, qi: (0, 0)),          # Wk
                pl.BlockSpec((1, c), lambda bi, qi: (0, 0)),          # bk
                pl.BlockSpec((c, c), lambda bi, qi: (0, 0)),          # Wv
                pl.BlockSpec((1, c), lambda bi, qi: (0, 0)),          # bv
                pl.BlockSpec((c, c), lambda bi, qi: (0, 0)),          # Wp
                pl.BlockSpec((1, c), lambda bi, qi: (0, 0)),          # bp
            ],
            out_specs=pl.BlockSpec((1, tq, c), lambda bi, qi: (bi, qi, 0)),
            scratch_shapes=[
                pltpu.VMEM((hw, c), jnp.bfloat16),   # K (full sequence)
                pltpu.VMEM((hw, c), jnp.bfloat16),   # V (full sequence)
                pltpu.VMEM((1, c), jnp.float32),     # GroupNorm mean per channel
                pltpu.VMEM((1, c), jnp.float32),     # GroupNorm rstd per channel
            ]),
        # q axis must be "arbitrary": K/V scratch written at qi == 0 is reused
        # by later q tiles of the same batch (a megacore split would give each
        # core uninitialized scratch). Batch axis stays "parallel".
        compiler_params=pltpu.CompilerParams(
            dimension_semantics=("parallel", "arbitrary"),
            vmem_limit_bytes=vmem_limit_bytes),
    )(x_seq, gamma, beta, gmat, wq_s, bq_s, wk, bk, wv, bv, wp, bp)

    # (B, HW, C) -> NCHW
    return jnp.transpose(out_seq, (0, 2, 1)).reshape(b, c, hh, ww)


# ---------------------------------------------------------------------------
# Parameters + pure-JAX reference (matches the PyTorch forward, f32 weights)
# ---------------------------------------------------------------------------
def make_params(key, c):
    ks = jax.random.split(key, 9)
    gamma = jax.random.normal(ks[0], (1, c), jnp.float32) * 0.1 + 1.0
    beta = jax.random.normal(ks[1], (1, c), jnp.float32) * 0.1

    # Conv2d 1x1 weights are (Cout, Cin, 1, 1) in torch; stored pre-transposed (Cin, Cout).
    def conv_w(k):
        return (jax.random.normal(k, (c, c), jnp.float32) / jnp.sqrt(c)).T

    wq, wk, wv, wp = conv_w(ks[2]), conv_w(ks[3]), conv_w(ks[4]), conv_w(ks[5])
    bq = jax.random.normal(ks[6], (1, c), jnp.float32) * 0.02
    bk = jax.random.normal(ks[7], (1, c), jnp.float32) * 0.02
    bv = jax.random.normal(ks[8], (1, c), jnp.float32) * 0.02
    bp = jnp.zeros((1, c), jnp.float32)
    return (gamma, beta, wq, bq, wk, bk, wv, bv, wp, bp)


def reference_jax(x_nchw, params, num_groups=32):
    gamma, beta, wq, bq, wk, bk, wv, bv, wp, bp = params
    b, c, h, w = x_nchw.shape
    xg = x_nchw.reshape(b, num_groups, c // num_groups, h, w)
    mean = jnp.mean(xg, axis=(2, 3, 4), keepdims=True)
    var = jnp.var(xg, axis=(2, 3, 4), keepdims=True)
    hn = ((xg - mean) / jnp.sqrt(var + EPS)).reshape(b, c, h, w)
    hn = hn * gamma.reshape(1, c, 1, 1) + beta.reshape(1, c, 1, 1)
    seq = jnp.transpose(hn.reshape(b, c, h * w), (0, 2, 1))          # (B, HW, C)
    q = seq @ wq + bq
    k = seq @ wk + bk
    v = seq @ wv + bv
    s = jnp.einsum('bqc,bkc->bqk', q, k) * (float(c) ** -0.5)
    p = jax.nn.softmax(s, axis=-1)
    o = jnp.einsum('bqk,bkc->bqc', p, v)
    o = o @ wp + bp
    o = jnp.transpose(o, (0, 2, 1)).reshape(b, c, h, w)
    return x_nchw + o


if __name__ == "__main__":
    key = jax.random.PRNGKey(0)
    kx, kp = jax.random.split(key)
    B, C, H, W = 2, 64, 16, 16        # C divisible by num_groups=32; HW = 256
    x = jax.random.normal(kx, (B, C, H, W), jnp.float32)
    params = make_params(kp, C)
    packed = prepack_params(params)   # one-time weight prepack

    # q_tile=128 -> two q tiles per batch: exercises the K/V-resident scratch
    # reuse across q tiles as well as the per-batch re-initialization path.
    out = attn_block_pallas(x, packed, q_tile=128)
    out = jax.block_until_ready(out)

    ref = jax.block_until_ready(reference_jax(x, params))
    assert out.shape == (B, C, H, W)
    # bf16 MXU operands (f32 accumulation) + approx reciprocal => looser
    # tolerance than a pure-f32 comparison.
    err = float(jnp.max(jnp.abs(out - ref)))
    assert jnp.allclose(out, ref, rtol=5e-2, atol=5e-2), f"max abs err {err}"

    print("KERNEL_OK")
</pallas_src>

<mosaic_0001>
module attributes {stable_mosaic.version = 11 : i64} {
  func.func @fused_attn_kernel(%arg0: i32, %arg1: i32, %arg2: memref<1x256x64xf32, #tpu.memory_space<vmem>>, %arg3: memref<1x64xf32, #tpu.memory_space<vmem>>, %arg4: memref<1x64xf32, #tpu.memory_space<vmem>>, %arg5: memref<64x64xf32, #tpu.memory_space<vmem>>, %arg6: memref<64x64xbf16, #tpu.memory_space<vmem>>, %arg7: memref<1x64xf32, #tpu.memory_space<vmem>>, %arg8: memref<64x64xbf16, #tpu.memory_space<vmem>>, %arg9: memref<1x64xf32, #tpu.memory_space<vmem>>, %arg10: memref<64x64xbf16, #tpu.memory_space<vmem>>, %arg11: memref<1x64xf32, #tpu.memory_space<vmem>>, %arg12: memref<64x64xbf16, #tpu.memory_space<vmem>>, %arg13: memref<1x64xf32, #tpu.memory_space<vmem>>, %arg14: memref<1x128x64xf32, #tpu.memory_space<vmem>>, %arg15: memref<256x64xbf16, #tpu.memory_space<vmem>>, %arg16: memref<256x64xbf16, #tpu.memory_space<vmem>>, %arg17: memref<1x64xf32, #tpu.memory_space<vmem>>, %arg18: memref<1x64xf32, #tpu.memory_space<vmem>>) attributes {dimension_semantics = [#tpu.dimension_semantics<parallel>, #tpu.dimension_semantics<arbitrary>], iteration_bounds = array<i64: 2, 2>, scalar_prefetch = 0 : i64, scratch_operands = 4 : i64, tpu.core_type = #tpu.core_type<tc>, window_params = [{transform_indices = @transform_0, window_bounds = array<i64: 1, 256, 64>}, {pipeline_mode = #tpu.pipeline_mode<synchronous>, transform_indices = @transform_1, window_bounds = array<i64: 1, 64>}, {pipeline_mode = #tpu.pipeline_mode<synchronous>, transform_indices = @transform_2, window_bounds = array<i64: 1, 64>}, {pipeline_mode = #tpu.pipeline_mode<synchronous>, transform_indices = @transform_3, window_bounds = array<i64: 64, 64>}, {pipeline_mode = #tpu.pipeline_mode<synchronous>, transform_indices = @transform_4, window_bounds = array<i64: 64, 64>}, {pipeline_mode = #tpu.pipeline_mode<synchronous>, transform_indices = @transform_5, window_bounds = array<i64: 1, 64>}, {pipeline_mode = #tpu.pipeline_mode<synchronous>, transform_indices = @transform_6, window_bounds = array<i64: 64, 64>}, {pipeline_mode = #tpu.pipeline_mode<synchronous>, transform_indices = @transform_7, window_bounds = array<i64: 1, 64>}, {pipeline_mode = #tpu.pipeline_mode<synchronous>, transform_indices = @transform_8, window_bounds = array<i64: 64, 64>}, {pipeline_mode = #tpu.pipeline_mode<synchronous>, transform_indices = @transform_9, window_bounds = array<i64: 1, 64>}, {pipeline_mode = #tpu.pipeline_mode<synchronous>, transform_indices = @transform_10, window_bounds = array<i64: 64, 64>}, {pipeline_mode = #tpu.pipeline_mode<synchronous>, transform_indices = @transform_11, window_bounds = array<i64: 1, 64>}, {transform_indices = @transform_12, window_bounds = array<i64: 1, 128, 64>}]} {
    %c0_i32 = arith.constant 0 : i32
    %0 = arith.cmpi eq, %arg1, %c0_i32 : i32
    %1 = arith.extui %0 : i1 to i32
    %c0_i32_0 = arith.constant 0 : i32
    %2 = arith.cmpi ne, %1, %c0_i32_0 : i32
    scf.if %2 {
      %c0_30 = arith.constant 0 : index
      %c0_31 = arith.constant 0 : index
      %c0_32 = arith.constant 0 : index
      %51 = vector.load %arg2[%c0_30, %c0_31, %c0_32] : memref<1x256x64xf32, #tpu.memory_space<vmem>>, vector<1x256x64xf32>
      %52 = vector.shape_cast %51 : vector<1x256x64xf32> to vector<256x64xf32>
      %c0_33 = arith.constant 0 : index
      %c0_34 = arith.constant 0 : index
      %53 = vector.load %arg3[%c0_33, %c0_34] : memref<1x64xf32, #tpu.memory_space<vmem>>, vector<1x64xf32>
      %c0_35 = arith.constant 0 : index
      %c0_36 = arith.constant 0 : index
      %54 = vector.load %arg4[%c0_35, %c0_36] : memref<1x64xf32, #tpu.memory_space<vmem>>, vector<1x64xf32>
      %c0_37 = arith.constant 0 : index
      %c0_38 = arith.constant 0 : index
      %55 = vector.load %arg5[%c0_37, %c0_38] : memref<64x64xf32, #tpu.memory_space<vmem>>, vector<64x64xf32>
      %cst_39 = arith.constant dense<0.000000e+00> : vector<64xf32>
      %56 = vector.multi_reduction <add>, %52, %cst_39 [0] : vector<256x64xf32> to vector<64xf32>
      %57 = vector.shape_cast %56 : vector<64xf32> to vector<1x64xf32>
      %cst_40 = arith.constant dense<0.000000e+00> : vector<1x64xf32>
      %58 = tpu.matmul %57, %55, %cst_40 {dimension_numbers = #tpu.dot_dimension_numbers<[1], [0], [0], [1], [0, 0, 1, 1], [], []>} : vector<1x64xf32>, vector<64x64xf32>, vector<1x64xf32> -> vector<1x64xf32>
      %59 = vector.broadcast %58 : vector<1x64xf32> to vector<256x64xf32>
      %60 = arith.subf %52, %59 : vector<256x64xf32>
      %61 = arith.mulf %60, %60 : vector<256x64xf32>
      %cst_41 = arith.constant dense<0.000000e+00> : vector<64xf32>
      %62 = vector.multi_reduction <add>, %61, %cst_41 [0] : vector<256x64xf32> to vector<64xf32>
      %63 = vector.shape_cast %62 : vector<64xf32> to vector<1x64xf32>
      %cst_42 = arith.constant dense<0.000000e+00> : vector<1x64xf32>
      %64 = tpu.matmul %63, %55, %cst_42 {dimension_numbers = #tpu.dot_dimension_numbers<[1], [0], [0], [1], [0, 0, 1, 1], [], []>} : vector<1x64xf32>, vector<64x64xf32>, vector<1x64xf32> -> vector<1x64xf32>
      %cst_43 = arith.constant 9.99999997E-7 : f32
      %65 = vector.broadcast %cst_43 : f32 to vector<1x64xf32>
      %66 = arith.addf %64, %65 : vector<1x64xf32>
      %67 = math.rsqrt %66 : vector<1x64xf32>
      %c0_44 = arith.constant 0 : index
      %c0_45 = arith.constant 0 : index
      %68 = vector.load %arg17[%c0_44, %c0_45] : memref<1x64xf32, #tpu.memory_space<vmem>>, vector<1x64xf32>
      tpu.vector_store %arg17[%c0_44, %c0_45], %58 {strides = array<i32>} : memref<1x64xf32, #tpu.memory_space<vmem>>, vector<1x64xf32>,
      %c0_46 = arith.constant 0 : index
      %c0_47 = arith.constant 0 : index
      %69 = vector.load %arg18[%c0_46, %c0_47] : memref<1x64xf32, #tpu.memory_space<vmem>>, vector<1x64xf32>
      tpu.vector_store %arg18[%c0_46, %c0_47], %67 {strides = array<i32>} : memref<1x64xf32, #tpu.memory_space<vmem>>, vector<1x64xf32>,
      %70 = arith.mulf %67, %53 : vector<1x64xf32>
      %71 = vector.broadcast %70 : vector<1x64xf32> to vector<256x64xf32>
      %72 = arith.mulf %60, %71 : vector<256x64xf32>
      %73 = vector.broadcast %54 : vector<1x64xf32> to vector<256x64xf32>
      %74 = arith.addf %72, %73 : vector<256x64xf32>
      %75 = arith.truncf %74 : vector<256x64xf32> to vector<256x64xbf16>
      %c0_48 = arith.constant 0 : index
      %c0_49 = arith.constant 0 : index
      %76 = vector.load %arg8[%c0_48, %c0_49] : memref<64x64xbf16, #tpu.memory_space<vmem>>, vector<64x64xbf16>
      %cst_50 = arith.constant dense<0.000000e+00> : vector<256x64xf32>
      %77 = tpu.matmul %75, %76, %cst_50 {dimension_numbers = #tpu.dot_dimension_numbers<[1], [0], [0], [1], [0, 0, 1, 1], [], []>} : vector<256x64xbf16>, vector<64x64xbf16>, vector<256x64xf32> -> vector<256x64xf32>
      %c0_51 = arith.constant 0 : index
      %c0_52 = arith.constant 0 : index
      %78 = vector.load %arg9[%c0_51, %c0_52] : memref<1x64xf32, #tpu.memory_space<vmem>>, vector<1x64xf32>
      %79 = vector.broadcast %78 : vector<1x64xf32> to vector<256x64xf32>
      %80 = arith.addf %77, %79 : vector<256x64xf32>
      %81 = arith.truncf %80 : vector<256x64xf32> to vector<256x64xbf16>
      %c0_53 = arith.constant 0 : index
      %c0_54 = arith.constant 0 : index
      %82 = vector.load %arg15[%c0_53, %c0_54] : memref<256x64xbf16, #tpu.memory_space<vmem>>, vector<256x64xbf16>
      tpu.vector_store %arg15[%c0_53, %c0_54], %81 {strides = array<i32>} : memref<256x64xbf16, #tpu.memory_space<vmem>>, vector<256x64xbf16>,
      %c0_55 = arith.constant 0 : index
      %c0_56 = arith.constant 0 : index
      %83 = vector.load %arg10[%c0_55, %c0_56] : memref<64x64xbf16, #tpu.memory_space<vmem>>, vector<64x64xbf16>
      %cst_57 = arith.constant dense<0.000000e+00> : vector<256x64xf32>
      %84 = tpu.matmul %75, %83, %cst_57 {dimension_numbers = #tpu.dot_dimension_numbers<[1], [0], [0], [1], [0, 0, 1, 1], [], []>} : vector<256x64xbf16>, vector<64x64xbf16>, vector<256x64xf32> -> vector<256x64xf32>
      %c0_58 = arith.constant 0 : index
      %c0_59 = arith.constant 0 : index
      %85 = vector.load %arg11[%c0_58, %c0_59] : memref<1x64xf32, #tpu.memory_space<vmem>>, vector<1x64xf32>
      %86 = vector.broadcast %85 : vector<1x64xf32> to vector<256x64xf32>
      %87 = arith.addf %84, %86 : vector<256x64xf32>
      %88 = arith.truncf %87 : vector<256x64xf32> to vector<256x64xbf16>
      %c0_60 = arith.constant 0 : index
      %c0_61 = arith.constant 0 : index
      %89 = vector.load %arg16[%c0_60, %c0_61] : memref<256x64xbf16, #tpu.memory_space<vmem>>, vector<256x64xbf16>
      tpu.vector_store %arg16[%c0_60, %c0_61], %88 {strides = array<i32>} : memref<256x64xbf16, #tpu.memory_space<vmem>>, vector<256x64xbf16>,
    } else {
    }
    %c128_i32 = arith.constant 128 : i32
    %3 = arith.muli %arg1, %c128_i32 : i32
    %4 = tpu.assume_multiple %3, 128 : i32
    %c0 = arith.constant 0 : index
    %5 = arith.index_cast %4 : i32 to index
    %c0_1 = arith.constant 0 : index
    %6 = vector.load %arg2[%c0, %5, %c0_1] : memref<1x256x64xf32, #tpu.memory_space<vmem>>, vector<1x128x64xf32>
    %7 = vector.shape_cast %6 : vector<1x128x64xf32> to vector<128x64xf32>
    %c0_2 = arith.constant 0 : index
    %c0_3 = arith.constant 0 : index
    %8 = vector.load %arg17[%c0_2, %c0_3] : memref<1x64xf32, #tpu.memory_space<vmem>>, vector<1x64xf32>
    %9 = vector.broadcast %8 : vector<1x64xf32> to vector<128x64xf32>
    %10 = arith.subf %7, %9 : vector<128x64xf32>
    %c0_4 = arith.constant 0 : index
    %c0_5 = arith.constant 0 : index
    %11 = vector.load %arg18[%c0_4, %c0_5] : memref<1x64xf32, #tpu.memory_space<vmem>>, vector<1x64xf32>
    %c0_6 = arith.constant 0 : index
    %c0_7 = arith.constant 0 : index
    %12 = vector.load %arg3[%c0_6, %c0_7] : memref<1x64xf32, #tpu.memory_space<vmem>>, vector<1x64xf32>
    %13 = arith.mulf %11, %12 : vector<1x64xf32>
    %14 = vector.broadcast %13 : vector<1x64xf32> to vector<128x64xf32>
    %15 = arith.mulf %10, %14 : vector<128x64xf32>
    %c0_8 = arith.constant 0 : index
    %c0_9 = arith.constant 0 : index
    %16 = vector.load %arg4[%c0_8, %c0_9] : memref<1x64xf32, #tpu.memory_space<vmem>>, vector<1x64xf32>
    %17 = vector.broadcast %16 : vector<1x64xf32> to vector<128x64xf32>
    %18 = arith.addf %15, %17 : vector<128x64xf32>
    %19 = arith.truncf %18 : vector<128x64xf32> to vector<128x64xbf16>
    %c0_10 = arith.constant 0 : index
    %c0_11 = arith.constant 0 : index
    %20 = vector.load %arg6[%c0_10, %c0_11] : memref<64x64xbf16, #tpu.memory_space<vmem>>, vector<64x64xbf16>
    %cst = arith.constant dense<0.000000e+00> : vector<128x64xf32>
    %21 = tpu.matmul %19, %20, %cst {dimension_numbers = #tpu.dot_dimension_numbers<[1], [0], [0], [1], [0, 0, 1, 1], [], []>} : vector<128x64xbf16>, vector<64x64xbf16>, vector<128x64xf32> -> vector<128x64xf32>
    %c0_12 = arith.constant 0 : index
    %c0_13 = arith.constant 0 : index
    %22 = vector.load %arg7[%c0_12, %c0_13] : memref<1x64xf32, #tpu.memory_space<vmem>>, vector<1x64xf32>
    %23 = vector.broadcast %22 : vector<1x64xf32> to vector<128x64xf32>
    %24 = arith.addf %21, %23 : vector<128x64xf32>
    %25 = arith.truncf %24 : vector<128x64xf32> to vector<128x64xbf16>
    %c0_14 = arith.constant 0 : index
    %c0_15 = arith.constant 0 : index
    %26 = vector.load %arg15[%c0_14, %c0_15] : memref<256x64xbf16, #tpu.memory_space<vmem>>, vector<256x64xbf16>
    %cst_16 = arith.constant dense<0.000000e+00> : vector<128x256xf32>
    %27 = tpu.matmul %25, %26, %cst_16 {dimension_numbers = #tpu.dot_dimension_numbers<[1], [1], [0], [0], [0, 0, 1, 0], [], []>} : vector<128x64xbf16>, vector<256x64xbf16>, vector<128x256xf32> -> vector<128x256xf32>
    %cst_17 = arith.constant dense<0xFF800000> : vector<128xf32>
    %28 = vector.multi_reduction <maximumf>, %27, %cst_17 [1] : vector<128x256xf32> to vector<128xf32>
    %29 = vector.shape_cast %28 : vector<128xf32> to vector<128x1xf32>
    %30 = vector.broadcast %29 : vector<128x1xf32> to vector<128x256xf32>
    %31 = arith.subf %27, %30 : vector<128x256xf32>
    %32 = math.exp %31 : vector<128x256xf32>
    %cst_18 = arith.constant dense<0.000000e+00> : vector<128xf32>
    %33 = vector.multi_reduction <add>, %32, %cst_18 [1] : vector<128x256xf32> to vector<128xf32>
    %34 = vector.shape_cast %33 : vector<128xf32> to vector<128x1xf32>
    %35 = arith.truncf %32 : vector<128x256xf32> to vector<128x256xbf16>
    %c0_19 = arith.constant 0 : index
    %c0_20 = arith.constant 0 : index
    %36 = vector.load %arg16[%c0_19, %c0_20] : memref<256x64xbf16, #tpu.memory_space<vmem>>, vector<256x64xbf16>
    %cst_21 = arith.constant dense<0.000000e+00> : vector<128x64xf32>
    %37 = tpu.matmul %35, %36, %cst_21 {dimension_numbers = #tpu.dot_dimension_numbers<[1], [0], [0], [1], [0, 0, 1, 1], [], []>} : vector<128x256xbf16>, vector<256x64xbf16>, vector<128x64xf32> -> vector<128x64xf32>
    %38 = tpu.reciprocal %34 {approx = true} : vector<128x1xf32> -> vector<128x1xf32>
    %39 = vector.broadcast %38 : vector<128x1xf32> to vector<128x64xf32>
    %40 = arith.mulf %37, %39 : vector<128x64xf32>
    %41 = arith.truncf %40 : vector<128x64xf32> to vector<128x64xbf16>
    %c0_22 = arith.constant 0 : index
    %c0_23 = arith.constant 0 : index
    %42 = vector.load %arg12[%c0_22, %c0_23] : memref<64x64xbf16, #tpu.memory_space<vmem>>, vector<64x64xbf16>
    %cst_24 = arith.constant dense<0.000000e+00> : vector<128x64xf32>
    %43 = tpu.matmul %41, %42, %cst_24 {dimension_numbers = #tpu.dot_dimension_numbers<[1], [0], [0], [1], [0, 0, 1, 1], [], []>} : vector<128x64xbf16>, vector<64x64xbf16>, vector<128x64xf32> -> vector<128x64xf32>
    %c0_25 = arith.constant 0 : index
    %c0_26 = arith.constant 0 : index
    %44 = vector.load %arg13[%c0_25, %c0_26] : memref<1x64xf32, #tpu.memory_space<vmem>>, vector<1x64xf32>
    %45 = vector.broadcast %44 : vector<1x64xf32> to vector<128x64xf32>
    %46 = arith.addf %43, %45 : vector<128x64xf32>
    %47 = arith.addf %7, %46 : vector<128x64xf32>
    %c0_27 = arith.constant 0 : index
    %c0_28 = arith.constant 0 : index
    %c0_29 = arith.constant 0 : index
    %48 = vector.load %arg14[%c0_27, %c0_28, %c0_29] : memref<1x128x64xf32, #tpu.memory_space<vmem>>, vector<1x128x64xf32>
    %49 = vector.shape_cast %48 : vector<1x128x64xf32> to vector<128x64xf32>
    %50 = vector.shape_cast %47 : vector<128x64xf32> to vector<1x128x64xf32>
    tpu.vector_store %arg14[%c0_27, %c0_28, %c0_29], %50 {strides = array<i32>} : memref<1x128x64xf32, #tpu.memory_space<vmem>>, vector<1x128x64xf32>,
    return
  }
  func.func @transform_0(%arg0: i32, %arg1: i32) -> (i32, i32, i32) {
    %c0_i32 = arith.constant 0 : i32
    %c0_i32_0 = arith.constant 0 : i32
    %c0_i32_1 = arith.constant 0 : i32
    return %arg0, %c0_i32, %c0_i32_0 : i32, i32, i32
  }
  func.func @transform_1(%arg0: i32, %arg1: i32) -> (i32, i32) {
    %c0_i32 = arith.constant 0 : i32
    %c0_i32_0 = arith.constant 0 : i32
    %c0_i32_1 = arith.constant 0 : i32
    return %c0_i32, %c0_i32_0 : i32, i32
  }
  func.func @transform_2(%arg0: i32, %arg1: i32) -> (i32, i32) {
    %c0_i32 = arith.constant 0 : i32
    %c0_i32_0 = arith.constant 0 : i32
    %c0_i32_1 = arith.constant 0 : i32
    return %c0_i32, %c0_i32_0 : i32, i32
  }
  func.func @transform_3(%arg0: i32, %arg1: i32) -> (i32, i32) {
    %c0_i32 = arith.constant 0 : i32
    %c0_i32_0 = arith.constant 0 : i32
    %c0_i32_1 = arith.constant 0 : i32
    return %c0_i32, %c0_i32_0 : i32, i32
  }
  func.func @transform_4(%arg0: i32, %arg1: i32) -> (i32, i32) {
    %c0_i32 = arith.constant 0 : i32
    %c0_i32_0 = arith.constant 0 : i32
    %c0_i32_1 = arith.constant 0 : i32
    return %c0_i32, %c0_i32_0 : i32, i32
  }
  func.func @transform_5(%arg0: i32, %arg1: i32) -> (i32, i32) {
    %c0_i32 = arith.constant 0 : i32
    %c0_i32_0 = arith.constant 0 : i32
    %c0_i32_1 = arith.constant 0 : i32
    return %c0_i32, %c0_i32_0 : i32, i32
  }
  func.func @transform_6(%arg0: i32, %arg1: i32) -> (i32, i32) {
    %c0_i32 = arith.constant 0 : i32
    %c0_i32_0 = arith.constant 0 : i32
    %c0_i32_1 = arith.constant 0 : i32
    return %c0_i32, %c0_i32_0 : i32, i32
  }
  func.func @transform_7(%arg0: i32, %arg1: i32) -> (i32, i32) {
    %c0_i32 = arith.constant 0 : i32
    %c0_i32_0 = arith.constant 0 : i32
    %c0_i32_1 = arith.constant 0 : i32
    return %c0_i32, %c0_i32_0 : i32, i32
  }
  func.func @transform_8(%arg0: i32, %arg1: i32) -> (i32, i32) {
    %c0_i32 = arith.constant 0 : i32
    %c0_i32_0 = arith.constant 0 : i32
    %c0_i32_1 = arith.constant 0 : i32
    return %c0_i32, %c0_i32_0 : i32, i32
  }
  func.func @transform_9(%arg0: i32, %arg1: i32) -> (i32, i32) {
    %c0_i32 = arith.constant 0 : i32
    %c0_i32_0 = arith.constant 0 : i32
    %c0_i32_1 = arith.constant 0 : i32
    return %c0_i32, %c0_i32_0 : i32, i32
  }
  func.func @transform_10(%arg0: i32, %arg1: i32) -> (i32, i32) {
    %c0_i32 = arith.constant 0 : i32
    %c0_i32_0 = arith.constant 0 : i32
    %c0_i32_1 = arith.constant 0 : i32
    return %c0_i32, %c0_i32_0 : i32, i32
  }
  func.func @transform_11(%arg0: i32, %arg1: i32) -> (i32, i32) {
    %c0_i32 = arith.constant 0 : i32
    %c0_i32_0 = arith.constant 0 : i32
    %c0_i32_1 = arith.constant 0 : i32
    return %c0_i32, %c0_i32_0 : i32, i32
  }
  func.func @transform_12(%arg0: i32, %arg1: i32) -> (i32, i32, i32) {
    %c0_i32 = arith.constant 0 : i32
    %c0_i32_0 = arith.constant 0 : i32
    return %arg0, %arg1, %c0_i32 : i32, i32, i32
  }
}

</mosaic_0001>

<llo_original>
// kernel: tpu_custom_call.1
$region0: #{tpu_custom_call.1}
  #allocation0 [shape = 'u32[]', space=smem, size = 0x4, offset = 0x4, fixed_abs, tag = 'smem constant byte address 0x4 - core index']
  #allocation1 [shape = 'u32[144,128]{1,0:T(1,128)}', space=vmem, size = 0x12000, scoped, tag = 'internal scratch']
  #allocation2 [shape = 'bf16[256,64]{1,0:T(16,128)(2,1)}', space=vmem, size = 0x10000, scoped, tag = 'scratch operand']
  #allocation3 [shape = 'bf16[256,64]{1,0:T(16,128)(2,1)}', space=vmem, size = 0x10000, scoped, tag = 'scratch operand']
  #allocation4 [shape = 'f32[1,64]{1,0:T(1,128)}', space=vmem, size = 0x200, scoped, tag = 'scratch operand']
  #allocation5 [shape = 'f32[1,64]{1,0:T(1,128)}', space=vmem, size = 0x200, scoped, tag = 'scratch operand']
  %s0 = inlined_call_operand.vmem [shape: f32[2,256,64], index: 0, kind: input, shape index: {}]
  %s1 = inlined_call_operand.vmem [shape: f32[1,64], index: 1, kind: input, shape index: {}]
  %s2 = inlined_call_operand.vmem [shape: f32[1,64], index: 2, kind: input, shape index: {}]
  %s3 = inlined_call_operand.vmem [shape: f32[64,64], index: 3, kind: input, shape index: {}]
  %s4 = inlined_call_operand.vmem [shape: bf16[64,64], index: 4, kind: input, shape index: {}]
  %s5 = inlined_call_operand.vmem [shape: f32[1,64], index: 5, kind: input, shape index: {}]
  %s6 = inlined_call_operand.vmem [shape: bf16[64,64], index: 6, kind: input, shape index: {}]
  %s7 = inlined_call_operand.vmem [shape: f32[1,64], index: 7, kind: input, shape index: {}]
  %s8 = inlined_call_operand.vmem [shape: bf16[64,64], index: 8, kind: input, shape index: {}]
  %s9 = inlined_call_operand.vmem [shape: f32[1,64], index: 9, kind: input, shape index: {}]
  %s10 = inlined_call_operand.vmem [shape: bf16[64,64], index: 10, kind: input, shape index: {}]
  %s11 = inlined_call_operand.vmem [shape: f32[1,64], index: 11, kind: input, shape index: {}]
  %s12 = inlined_call_operand.vmem [shape: f32[2,256,64], index: 12, kind: output, shape index: {}]
  %s13 = sld [smem:[#allocation0]]
  $region85: #{tpu_custom_call.1} parent=0
    _
  %s15 = ssub.s32 1, %s13
  %s16 = scalar_select 0, %s15, %s13
  loop: start=0, step=1, limit=6
  $region2: #{tpu_custom_call.1} parent=0 // loop_pre_header
    _
  $region3: #{tpu_custom_call.1} parent=0 // loop_header
    %s18 = sphi 0, %s22
    %p19 = scmp.ge.s32.totalorder %s18, 6
    %s25 = sphi 0, %s37
    %s26 = sphi 0, %s33
    %s27 = sphi 0, %s25
    %s28 = sphi 0, %s26
    %s29 = sphi 0, %s27
    %s30 = sphi 0, %s28
    %s40 = sphi 0, %s42
    %s43 = sphi 0, %s40
    %s44 = sphi 0, %s43
    %s60 = sphi 0, %s44
    %s64 = sphi 0, %s64
    %s66 = sphi 0, %s64
    %s67 = sphi 0, %s66
    %s81 = sphi 0, %s67
    %s85 = sphi 0, %s85
    %s87 = sphi 0, %s85
    %s88 = sphi 0, %s87
    %s102 = sphi 0, %s88
    %s106 = sphi 0, %s106
    %s108 = sphi 0, %s106
    %s109 = sphi 0, %s108
    %s123 = sphi 0, %s109
    %s127 = sphi 0, %s127
    %s129 = sphi 0, %s127
    %s130 = sphi 0, %s129
    %s144 = sphi 0, %s130
    %s148 = sphi 0, %s148
    %s150 = sphi 0, %s148
    %s151 = sphi 0, %s150
    %s165 = sphi 0, %s151
    %s169 = sphi 0, %s169
    %s171 = sphi 0, %s169
    %s172 = sphi 0, %s171
    %s186 = sphi 0, %s172
    %s190 = sphi 0, %s190
    %s192 = sphi 0, %s190
    %s193 = sphi 0, %s192
    %s207 = sphi 0, %s193
    %s211 = sphi 0, %s211
    %s213 = sphi 0, %s211
    %s214 = sphi 0, %s213
    %s228 = sphi 0, %s214
    %s232 = sphi 0, %s232
    %s234 = sphi 0, %s232
    %s235 = sphi 0, %s234
    %s249 = sphi 0, %s235
    %s253 = sphi 0, %s253
    %s255 = sphi 0, %s253
    %s256 = sphi 0, %s255
    %s270 = sphi 0, %s256
    %s274 = sphi 0, %s274
    %s276 = sphi 0, %s274
    %s277 = sphi 0, %s276
    %s291 = sphi 0, %s277
    %s299 = sphi 0, %s301
    %s302 = sphi 0, %s299
    %s303 = sphi 0, %s302
    %s319 = sphi 0, %s303
  $region4: #{tpu_custom_call.1} parent=0 // loop_header_branch
    %21 = sbr.rel (%p19) target = $region8
  $region5: #{tpu_custom_call.1} parent=0 // loop_body
    %s23 = ssub.s32 %s18, 1
    %s24 = ssub.s32 %s18, 2
    %s31 = sadd.s32 1, %s26
    %p32 = scmp.ge.s32.totalorder %s31, 2
    %s33 = scalar_select %p32, 0, %s31
    %s34 = sadd.s32 1, %s25
    %s35 = scalar_select %p32, %s34, %s25
    %p36 = scmp.ge.s32.totalorder %s35, 2
    %s37 = scalar_select %p36, 0, %s35
    %s38 = ssub.s32 %s25, %s37
    %p39 = scmp.eq.s32.totalorder %s38, 0
    %s41 = sadd.s32 %s40, 1
    %s42 = scalar_select %p39, %s40, %s41
    %p45 = pneg %p39
    %p46 = scmp.eq.s32.totalorder %s18, 3
    %p47 = por %p45, %p46
    %p48 = scmp.ne.s32.totalorder %s40, %s43
    %p49 = scmp.eq.s32.totalorder %s18, 0
    %p50 = por %p48, %p49
    %p51 = scmp.ne.s32.totalorder %s40, %s43
    %p52 = scmp.eq.s32.totalorder %s23, 3
    %p53 = por %p51, %p52
    %p54 = scmp.ne.s32.totalorder %s43, %s44
    %p55 = scmp.eq.s32.totalorder %s23, 0
    %p56 = por %p54, %p55
    %p57 = scmp.ne.s32.totalorder %s43, %s44
    %p58 = scmp.eq.s32.totalorder %s24, 3
    %p59 = por %p57, %p58
    %p61 = scmp.ne.s32.totalorder %s44, %s60
    %p62 = scmp.eq.s32.totalorder %s24, 0
    %p63 = por %p61, %p62
    %s65 = sadd.s32 %s64, 1
    %p68 = scmp.eq.s32.totalorder %s18, 3
    %p69 = scmp.ne.s32.totalorder %s64, %s66
    %p70 = scmp.eq.s32.totalorder %s18, 0
    %p71 = por %p69, %p70
    %p72 = scmp.ne.s32.totalorder %s64, %s66
    %p73 = scmp.eq.s32.totalorder %s23, 3
    %p74 = por %p72, %p73
    %p75 = scmp.ne.s32.totalorder %s66, %s67
    %p76 = scmp.eq.s32.totalorder %s23, 0
    %p77 = por %p75, %p76
    %p78 = scmp.ne.s32.totalorder %s66, %s67
    %p79 = scmp.eq.s32.totalorder %s24, 3
    %p80 = por %p78, %p79
    %p82 = scmp.ne.s32.totalorder %s67, %s81
    %p83 = scmp.eq.s32.totalorder %s24, 0
    %p84 = por %p82, %p83
    %s86 = sadd.s32 %s85, 1
    %p89 = scmp.eq.s32.totalorder %s18, 3
    %p90 = scmp.ne.s32.totalorder %s85, %s87
    %p91 = scmp.eq.s32.totalorder %s18, 0
    %p92 = por %p90, %p91
    %p93 = scmp.ne.s32.totalorder %s85, %s87
    %p94 = scmp.eq.s32.totalorder %s23, 3
    %p95 = por %p93, %p94
    %p96 = scmp.ne.s32.totalorder %s87, %s88
    %p97 = scmp.eq.s32.totalorder %s23, 0
    %p98 = por %p96, %p97
    %p99 = scmp.ne.s32.totalorder %s87, %s88
    %p100 = scmp.eq.s32.totalorder %s24, 3
    %p101 = por %p99, %p100
    %p103 = scmp.ne.s32.totalorder %s88, %s102
    %p104 = scmp.eq.s32.totalorder %s24, 0
    %p105 = por %p103, %p104
    %s107 = sadd.s32 %s106, 1
    %p110 = scmp.eq.s32.totalorder %s18, 3
    %p111 = scmp.ne.s32.totalorder %s106, %s108
    %p112 = scmp.eq.s32.totalorder %s18, 0
    %p113 = por %p111, %p112
    %p114 = scmp.ne.s32.totalorder %s106, %s108
    %p115 = scmp.eq.s32.totalorder %s23, 3
    %p116 = por %p114, %p115
    %p117 = scmp.ne.s32.totalorder %s108, %s109
    %p118 = scmp.eq.s32.totalorder %s23, 0
    %p119 = por %p117, %p118
    %p120 = scmp.ne.s32.totalorder %s108, %s109
    %p121 = scmp.eq.s32.totalorder %s24, 3
    %p122 = por %p120, %p121
    %p124 = scmp.ne.s32.totalorder %s109, %s123
    %p125 = scmp.eq.s32.totalorder %s24, 0
    %p126 = por %p124, %p125
    %s128 = sadd.s32 %s127, 1
    %p131 = scmp.eq.s32.totalorder %s18, 3
    %p132 = scmp.ne.s32.totalorder %s127, %s129
    %p133 = scmp.eq.s32.totalorder %s18, 0
    %p134 = por %p132, %p133
    %p135 = scmp.ne.s32.totalorder %s127, %s129
    %p136 = scmp.eq.s32.totalorder %s23, 3
    %p137 = por %p135, %p136
    %p138 = scmp.ne.s32.totalorder %s129, %s130
    %p139 = scmp.eq.s32.totalorder %s23, 0
    %p140 = por %p138, %p139
    %p141 = scmp.ne.s32.totalorder %s129, %s130
    %p142 = scmp.eq.s32.totalorder %s24, 3
    %p143 = por %p141, %p142
    %p145 = scmp.ne.s32.totalorder %s130, %s144
    %p146 = scmp.eq.s32.totalorder %s24, 0
    %p147 = por %p145, %p146
    %s149 = sadd.s32 %s148, 1
    %p152 = scmp.eq.s32.totalorder %s18, 3
    %p153 = scmp.ne.s32.totalorder %s148, %s150
    %p154 = scmp.eq.s32.totalorder %s18, 0
    %p155 = por %p153, %p154
    %p156 = scmp.ne.s32.totalorder %s148, %s150
    %p157 = scmp.eq.s32.totalorder %s23, 3
    %p158 = por %p156, %p157
    %p159 = scmp.ne.s32.totalorder %s150, %s151
    %p160 = scmp.eq.s32.totalorder %s23, 0
    %p161 = por %p159, %p160
    %p162 = scmp.ne.s32.totalorder %s150, %s151
    %p163 = scmp.eq.s32.totalorder %s24, 3
    %p164 = por %p162, %p163
    %p166 = scmp.ne.s32.totalorder %s151, %s165
    %p167 = scmp.eq.s32.totalorder %s24, 0
    %p168 = por %p166, %p167
    %s170 = sadd.s32 %s169, 1
    %p173 = scmp.eq.s32.totalorder %s18, 3
    %p174 = scmp.ne.s32.totalorder %s169, %s171
    %p175 = scmp.eq.s32.totalorder %s18, 0
    %p176 = por %p174, %p175
    %p177 = scmp.ne.s32.totalorder %s169, %s171
    %p178 = scmp.eq.s32.totalorder %s23, 3
    %p179 = por %p177, %p178
    %p180 = scmp.ne.s32.totalorder %s171, %s172
    %p181 = scmp.eq.s32.totalorder %s23, 0
    %p182 = por %p180, %p181
    %p183 = scmp.ne.s32.totalorder %s171, %s172
    %p184 = scmp.eq.s32.totalorder %s24, 3
    %p185 = por %p183, %p184
    %p187 = scmp.ne.s32.totalorder %s172, %s186
    %p188 = scmp.eq.s32.totalorder %s24, 0
    %p189 = por %p187, %p188
    %s191 = sadd.s32 %s190, 1
    %p194 = scmp.eq.s32.totalorder %s18, 3
    %p195 = scmp.ne.s32.totalorder %s190, %s192
    %p196 = scmp.eq.s32.totalorder %s18, 0
    %p197 = por %p195, %p196
    %p198 = scmp.ne.s32.totalorder %s190, %s192
    %p199 = scmp.eq.s32.totalorder %s23, 3
    %p200 = por %p198, %p199
    %p201 = scmp.ne.s32.totalorder %s192, %s193
    %p202 = scmp.eq.s32.totalorder %s23, 0
    %p203 = por %p201, %p202
    %p204 = scmp.ne.s32.totalorder %s192, %s193
    %p205 = scmp.eq.s32.totalorder %s24, 3
    %p206 = por %p204, %p205
    %p208 = scmp.ne.s32.totalorder %s193, %s207
    %p209 = scmp.eq.s32.totalorder %s24, 0
    %p210 = por %p208, %p209
    %s212 = sadd.s32 %s211, 1
    %p215 = scmp.eq.s32.totalorder %s18, 3
    %p216 = scmp.ne.s32.totalorder %s211, %s213
    %p217 = scmp.eq.s32.totalorder %s18, 0
    %p218 = por %p216, %p217
    %p219 = scmp.ne.s32.totalorder %s211, %s213
    %p220 = scmp.eq.s32.totalorder %s23, 3
    %p221 = por %p219, %p220
    %p222 = scmp.ne.s32.totalorder %s213, %s214
    %p223 = scmp.eq.s32.totalorder %s23, 0
    %p224 = por %p222, %p223
    %p225 = scmp.ne.s32.totalorder %s213, %s214
    %p226 = scmp.eq.s32.totalorder %s24, 3
    %p227 = por %p225, %p226
    %p229 = scmp.ne.s32.totalorder %s214, %s228
    %p230 = scmp.eq.s32.totalorder %s24, 0
    %p231 = por %p229, %p230
    %s233 = sadd.s32 %s232, 1
    %p236 = scmp.eq.s32.totalorder %s18, 3
    %p237 = scmp.ne.s32.totalorder %s232, %s234
    %p238 = scmp.eq.s32.totalorder %s18, 0
    %p239 = por %p237, %p238
    %p240 = scmp.ne.s32.totalorder %s232, %s234
    %p241 = scmp.eq.s32.totalorder %s23, 3
    %p242 = por %p240, %p241
    %p243 = scmp.ne.s32.totalorder %s234, %s235
    %p244 = scmp.eq.s32.totalorder %s23, 0
    %p245 = por %p243, %p244
    %p246 = scmp.ne.s32.totalorder %s234, %s235
    %p247 = scmp.eq.s32.totalorder %s24, 3
    %p248 = por %p246, %p247
    %p250 = scmp.ne.s32.totalorder %s235, %s249
    %p251 = scmp.eq.s32.totalorder %s24, 0
    %p252 = por %p250, %p251
    %s254 = sadd.s32 %s253, 1
    %p257 = scmp.eq.s32.totalorder %s18, 3
    %p258 = scmp.ne.s32.totalorder %s253, %s255
    %p259 = scmp.eq.s32.totalorder %s18, 0
    %p260 = por %p258, %p259
    %p261 = scmp.ne.s32.totalorder %s253, %s255
    %p262 = scmp.eq.s32.totalorder %s23, 3
    %p263 = por %p261, %p262
    %p264 = scmp.ne.s32.totalorder %s255, %s256
    %p265 = scmp.eq.s32.totalorder %s23, 0
    %p266 = por %p264, %p265
    %p267 = scmp.ne.s32.totalorder %s255, %s256
    %p268 = scmp.eq.s32.totalorder %s24, 3
    %p269 = por %p267, %p268
    %p271 = scmp.ne.s32.totalorder %s256, %s270
    %p272 = scmp.eq.s32.totalorder %s24, 0
    %p273 = por %p271, %p272
    %s275 = sadd.s32 %s274, 1
    %p278 = scmp.eq.s32.totalorder %s18, 3
    %p279 = scmp.ne.s32.totalorder %s274, %s276
    %p280 = scmp.eq.s32.totalorder %s18, 0
    %p281 = por %p279, %p280
    %p282 = scmp.ne.s32.totalorder %s274, %s276
    %p283 = scmp.eq.s32.totalorder %s23, 3
    %p284 = por %p282, %p283
    %p285 = scmp.ne.s32.totalorder %s276, %s277
    %p286 = scmp.eq.s32.totalorder %s23, 0
    %p287 = por %p285, %p286
    %p288 = scmp.ne.s32.totalorder %s276, %s277
    %p289 = scmp.eq.s32.totalorder %s24, 3
    %p290 = por %p288, %p289
    %p292 = scmp.ne.s32.totalorder %s277, %s291
    %p293 = scmp.eq.s32.totalorder %s24, 0
    %p294 = por %p292, %p293
    %s295 = ssub.s32 %s25, %s37
    %s296 = ssub.s32 %s26, %s33
    %s297 = sor.u32 %s295, %s296
    %p298 = scmp.eq.s32.totalorder %s297, 0
    %s300 = sadd.s32 %s299, 1
    %s301 = scalar_select %p298, %s299, %s300
    %p304 = pneg %p298
    %p305 = scmp.eq.s32.totalorder %s18, 3
    %p306 = por %p304, %p305
    %p307 = scmp.ne.s32.totalorder %s299, %s302
    %p308 = scmp.eq.s32.totalorder %s18, 0
    %p309 = por %p307, %p308
    %p310 = scmp.ne.s32.totalorder %s299, %s302
    %p311 = scmp.eq.s32.totalorder %s23, 3
    %p312 = por %p310, %p311
    %p313 = scmp.ne.s32.totalorder %s302, %s303
    %p314 = scmp.eq.s32.totalorder %s23, 0
    %p315 = por %p313, %p314
    %p316 = scmp.ne.s32.totalorder %s302, %s303
    %p317 = scmp.eq.s32.totalorder %s24, 3
    %p318 = por %p316, %p317
    %p320 = scmp.ne.s32.totalorder %s303, %s319
    %p321 = scmp.eq.s32.totalorder %s24, 0
    %p322 = por %p320, %p321
    %p323 = scmp.le.s32.totalorder 1, %s18
    %p324 = scmp.lt.s32.totalorder %s18, 5
    %p325 = pnand %p323, %p324
    %p326 = pneg %p325
    // Predicated region
    $region9: #{tpu_custom_call.1} parent=5 // pred_check
      _
    $region10: #{tpu_custom_call.1} parent=5 // pred_check_branch
      %328 = sbr.rel (%p325) target = $region12
    $region11: #{tpu_custom_call.1} parent=5 // pred_region
      %s329 = ssub.s32 %s18, 1
      // Predicated region
      $region13: #{tpu_custom_call.1} parent=11 // pred_check
        %p330 = pneg %p77
      $region14: #{tpu_custom_call.1} parent=11 // pred_check_branch
        %332 = sbr.rel (%p330) target = $region16
      $region15: #{tpu_custom_call.1} parent=11 // pred_region
        _
      $region16: #{tpu_custom_call.1} parent=11 // pred_fallthru
        _
      // Predicated region
      $region17: #{tpu_custom_call.1} parent=11 // pred_check
        %p333 = pneg %p98
      $region18: #{tpu_custom_call.1} parent=11 // pred_check_branch
        %335 = sbr.rel (%p333) target = $region20
      $region19: #{tpu_custom_call.1} parent=11 // pred_region
        _
      $region20: #{tpu_custom_call.1} parent=11 // pred_fallthru
        _
      // Predicated region
      $region21: #{tpu_custom_call.1} parent=11 // pred_check
        %p336 = pneg %p119
      $region22: #{tpu_custom_call.1} parent=11 // pred_check_branch
        %338 = sbr.rel (%p336) target = $region24
      $region23: #{tpu_custom_call.1} parent=11 // pred_region
        _
      $region24: #{tpu_custom_call.1} parent=11 // pred_fallthru
        _
      // Predicated region
      $region25: #{tpu_custom_call.1} parent=11 // pred_check
        %p339 = pneg %p140
      $region26: #{tpu_custom_call.1} parent=11 // pred_check_branch
        %341 = sbr.rel (%p339) target = $region28
      $region27: #{tpu_custom_call.1} parent=11 // pred_region
        _
      $region28: #{tpu_custom_call.1} parent=11 // pred_fallthru
        _
      // Predicated region
      $region29: #{tpu_custom_call.1} parent=11 // pred_check
        %p342 = pneg %p161
      $region30: #{tpu_custom_call.1} parent=11 // pred_check_branch
        %344 = sbr.rel (%p342) target = $region32
      $region31: #{tpu_custom_call.1} parent=11 // pred_region
        _
      $region32: #{tpu_custom_call.1} parent=11 // pred_fallthru
        _
      // Predicated region
      $region33: #{tpu_custom_call.1} parent=11 // pred_check
        %p345 = pneg %p182
      $region34: #{tpu_custom_call.1} parent=11 // pred_check_branch
        %347 = sbr.rel (%p345) target = $region36
      $region35: #{tpu_custom_call.1} parent=11 // pred_region
        _
      $region36: #{tpu_custom_call.1} parent=11 // pred_fallthru
        _
      // Predicated region
      $region37: #{tpu_custom_call.1} parent=11 // pred_check
        %p348 = pneg %p203
      $region38: #{tpu_custom_call.1} parent=11 // pred_check_branch
        %350 = sbr.rel (%p348) target = $region40
      $region39: #{tpu_custom_call.1} parent=11 // pred_region
        _
      $region40: #{tpu_custom_call.1} parent=11 // pred_fallthru
        _
      // Predicated region
      $region41: #{tpu_custom_call.1} parent=11 // pred_check
        %p351 = pneg %p224
      $region42: #{tpu_custom_call.1} parent=11 // pred_check_branch
        %353 = sbr.rel (%p351) target = $region44
      $region43: #{tpu_custom_call.1} parent=11 // pred_region
        _
      $region44: #{tpu_custom_call.1} parent=11 // pred_fallthru
        _
      // Predicated region
      $region45: #{tpu_custom_call.1} parent=11 // pred_check
        %p354 = pneg %p245
      $region46: #{tpu_custom_call.1} parent=11 // pred_check_branch
        %356 = sbr.rel (%p354) target = $region48
      $region47: #{tpu_custom_call.1} parent=11 // pred_region
        _
      $region48: #{tpu_custom_call.1} parent=11 // pred_fallthru
        _
      // Predicated region
      $region49: #{tpu_custom_call.1} parent=11 // pred_check
        %p357 = pneg %p266
      $region50: #{tpu_custom_call.1} parent=11 // pred_check_branch
        %359 = sbr.rel (%p357) target = $region52
      $region51: #{tpu_custom_call.1} parent=11 // pred_region
        _
      $region52: #{tpu_custom_call.1} parent=11 // pred_fallthru
        _
      // Predicated region
      $region53: #{tpu_custom_call.1} parent=11 // pred_check
        %p360 = pneg %p287
      $region54: #{tpu_custom_call.1} parent=11 // pred_check_branch
        %362 = sbr.rel (%p360) target = $region56
      $region55: #{tpu_custom_call.1} parent=11 // pred_region
        _
      $region56: #{tpu_custom_call.1} parent=11 // pred_fallthru
        _
    $region12: #{tpu_custom_call.1} parent=5 // pred_fallthru
      _
    %p363 = scmp.lt.s32.totalorder %s18, 4
    // Predicated region
    $region57: #{tpu_custom_call.1} parent=5 // pred_check
      %p364 = pneg %p363
    $region58: #{tpu_custom_call.1} parent=5 // pred_check_branch
      %366 = sbr.rel (%p364) target = $region60
    $region59: #{tpu_custom_call.1} parent=5 // pred_region
      // Predicated region
      $region61: #{tpu_custom_call.1} parent=59 // pred_check
        %p367 = pneg %p50
      $region62: #{tpu_custom_call.1} parent=59 // pred_check_branch
        %369 = sbr.rel (%p367) target = $region64
      $region63: #{tpu_custom_call.1} parent=59 // pred_region
        %p370 = scmp.lt.s32.totalorder %s25, 1
        %s371 = scalar_select %p370, %s25, 1
        %s372 = smul.addr %s371, 32
        %s373 = smul.addr %s372, 8
        %s374 = scalar_lea.vmem %s0, %s373
      $region64: #{tpu_custom_call.1} parent=59 // pred_fallthru
        _
    $region60: #{tpu_custom_call.1} parent=5 // pred_fallthru
      _
    %p375 = scmp.le.s32.totalorder 1, %s18
    %p376 = scmp.lt.s32.totalorder %s18, 5
    %p377 = pnand %p375, %p376
    %p378 = pneg %p377
    // Predicated region
    $region65: #{tpu_custom_call.1} parent=5 // pred_check
      _
    $region66: #{tpu_custom_call.1} parent=5 // pred_check_branch
      %380 = sbr.rel (%p377) target = $region68
    $region67: #{tpu_custom_call.1} parent=5 // pred_region
      %s381 = ssub.s32 %s18, 1
      %p382 = scmp.lt.s32.totalorder %s27, 1
      %s383 = scalar_select %p382, %s27, 1
      %s384 = smul.addr %s383, 32
      %s385 = smul.addr %s384, 8
      %s386 = scalar_lea.vmem %s0, %s385
      %p387 = pneg %p56
      %p388 = pneg %p53
      %p389 = pneg %p77
      %p390 = pneg %p74
      %p391 = pneg %p98
      %p392 = pneg %p95
      %p393 = pneg %p119
      %p394 = pneg %p116
      %p395 = pneg %p140
      %p396 = pneg %p137
      %p397 = pneg %p161
      %p398 = pneg %p158
      %p399 = pneg %p182
      %p400 = pneg %p179
      %p401 = pneg %p203
      %p402 = pneg %p200
      %p403 = pneg %p224
      %p404 = pneg %p221
      %p405 = pneg %p245
      %p406 = pneg %p242
      %p407 = pneg %p266
      %p408 = pneg %p263
      %p409 = pneg %p287
      %p410 = pneg %p284
      %p411 = pneg %p315
      %p412 = pneg %p312
      %s413 = smul.u32 16, %s28
      %p414 = scmp.lt.s32.totalorder %s27, 1
      %s415 = scalar_select %p414, %s27, 1
      %p416 = scmp.lt.s32.totalorder %s413, 31
      %s417 = scalar_select %p416, %s413, 31
      %s418 = smul.addr %s415, 32
      %s419 = sadd.s32 %s417, %s418
      %s420 = smul.addr %s419, 8
      %s421 = scalar_lea.vmem %s12, %s420
      %p422 = scmp.lt.s32.totalorder %s27, 1
      %s423 = scalar_select %p422, %s27, 1
      %s424 = smul.addr %s423, 32
      %s425 = smul.addr %s424, 8
      %s426 = scalar_lea.vmem %s0, %s425
      %s427 = smul.u32 16, %s28
      %p428 = scmp.lt.s32.totalorder %s27, 1
      %s429 = scalar_select %p428, %s27, 1
      %p430 = scmp.lt.s32.totalorder %s427, 31
      %s431 = scalar_select %p430, %s427, 31
      %s432 = smul.addr %s429, 32
      %s433 = sadd.s32 %s431, %s432
      %s434 = smul.addr %s433, 8
      %s435 = scalar_lea.vmem %s12, %s434
      %s436 = smul.u32 16, %s28
      %p438 = scmp.eq.s32.totalorder %s28, 0
      // Predicated region
      $region69: #{tpu_custom_call.1} parent=67 // pred_check
        %p439 = pneg %p438
      $region70: #{tpu_custom_call.1} parent=67 // pred_check_branch
        %441 = sbr.rel (%p439) target = $region72
      $region71: #{tpu_custom_call.1} parent=67 // pred_region
        %v442 = vld [vmem:[%s426] sm:$0xff]
        %v443 = vld [vmem:[%s426 + $0x8] sm:$0xff]
        %v444 = vld [vmem:[%s426 + $0x10] sm:$0xff]
        %v445 = vld [vmem:[%s426 + $0x18] sm:$0xff]
        %v446 = vld [vmem:[%s426 + $0x20] sm:$0xff]
        %v447 = vld [vmem:[%s426 + $0x28] sm:$0xff]
        %v448 = vld [vmem:[%s426 + $0x30] sm:$0xff]
        %v449 = vld [vmem:[%s426 + $0x38] sm:$0xff]
        %v450 = vld [vmem:[%s426 + $0x40] sm:$0xff]
        %v451 = vld [vmem:[%s426 + $0x48] sm:$0xff]
        %v452 = vld [vmem:[%s426 + $0x50] sm:$0xff]
        %v453 = vld [vmem:[%s426 + $0x58] sm:$0xff]
        %v454 = vld [vmem:[%s426 + $0x60] sm:$0xff]
        %v455 = vld [vmem:[%s426 + $0x68] sm:$0xff]
        %v456 = vld [vmem:[%s426 + $0x70] sm:$0xff]
        %v457 = vld [vmem:[%s426 + $0x78] sm:$0xff]
        %v458 = vld [vmem:[%s426 + $0x80] sm:$0xff]
        %v459 = vld [vmem:[%s426 + $0x88] sm:$0xff]
        %v460 = vld [vmem:[%s426 + $0x90] sm:$0xff]
        %v461 = vld [vmem:[%s426 + $0x98] sm:$0xff]
        %v462 = vld [vmem:[%s426 + $0xa0] sm:$0xff]
        %v463 = vld [vmem:[%s426 + $0xa8] sm:$0xff]
        %v464 = vld [vmem:[%s426 + $0xb0] sm:$0xff]
        %v465 = vld [vmem:[%s426 + $0xb8] sm:$0xff]
        %v466 = vld [vmem:[%s426 + $0xc0] sm:$0xff]
        %v467 = vld [vmem:[%s426 + $0xc8] sm:$0xff]
        %v468 = vld [vmem:[%s426 + $0xd0] sm:$0xff]
        %v469 = vld [vmem:[%s426 + $0xd8] sm:$0xff]
        %v470 = vld [vmem:[%s426 + $0xe0] sm:$0xff]
        %v471 = vld [vmem:[%s426 + $0xe8] sm:$0xff]
        %v472 = vld [vmem:[%s426 + $0xf0] sm:$0xff]
        %v473 = vld [vmem:[%s426 + $0xf8] sm:$0xff]
        %v474 = vld [vmem:[%s1] sm:$0x1]
        %v475 = vld [vmem:[%s2] sm:$0x1]
        %v476 = vld [vmem:[%s3] sm:$0xff]
        %v477 = vld [vmem:[%s3 + $0x8] sm:$0xff]
        %v478 = vld [vmem:[%s3 + $0x10] sm:$0xff]
        %v479 = vld [vmem:[%s3 + $0x18] sm:$0xff]
        %v480 = vld [vmem:[%s3 + $0x20] sm:$0xff]
        %v481 = vld [vmem:[%s3 + $0x28] sm:$0xff]
        %v482 = vld [vmem:[%s3 + $0x30] sm:$0xff]
        %v483 = vld [vmem:[%s3 + $0x38] sm:$0xff]
        %vm484 = vcmask 523264
        %v485 = vsel %vm484, %v442, 0.0
        %v486 = vsel %vm484, %v443, 0.0
        %v487 = vadd.f32 %v485, %v486
        %v488 = vsel %vm484, %v444, 0.0
        %v489 = vadd.f32 %v487, %v488
        %v490 = vsel %vm484, %v445, 0.0
        %v491 = vadd.f32 %v489, %v490
        %v492 = vsel %vm484, %v446, 0.0
        %v493 = vadd.f32 %v491, %v492
        %v494 = vsel %vm484, %v447, 0.0
        %v495 = vadd.f32 %v493, %v494
        %v496 = vsel %vm484, %v448, 0.0
        %v497 = vadd.f32 %v495, %v496
        %v498 = vsel %vm484, %v449, 0.0
        %v499 = vadd.f32 %v497, %v498
        %v500 = vsel %vm484, %v450, 0.0
        %v501 = vadd.f32 %v499, %v500
        %v502 = vsel %vm484, %v451, 0.0
        %v503 = vadd.f32 %v501, %v502
        %v504 = vsel %vm484, %v452, 0.0
        %v505 = vadd.f32 %v503, %v504
        %v506 = vsel %vm484, %v453, 0.0
        %v507 = vadd.f32 %v505, %v506
        %v508 = vsel %vm484, %v454, 0.0
        %v509 = vadd.f32 %v507, %v508
        %v510 = vsel %vm484, %v455, 0.0
        %v511 = vadd.f32 %v509, %v510
        %v512 = vsel %vm484, %v456, 0.0
        %v513 = vadd.f32 %v511, %v512
        %v514 = vsel %vm484, %v457, 0.0
        %v515 = vadd.f32 %v513, %v514
        %v516 = vsel %vm484, %v458, 0.0
        %v517 = vadd.f32 %v515, %v516
        %v518 = vsel %vm484, %v459, 0.0
        %v519 = vadd.f32 %v517, %v518
        %v520 = vsel %vm484, %v460, 0.0
        %v521 = vadd.f32 %v519, %v520
        %v522 = vsel %vm484, %v461, 0.0
        %v523 = vadd.f32 %v521, %v522
        %v524 = vsel %vm484, %v462, 0.0
        %v525 = vadd.f32 %v523, %v524
        %v526 = vsel %vm484, %v463, 0.0
        %v527 = vadd.f32 %v525, %v526
        %v528 = vsel %vm484, %v464, 0.0
        %v529 = vadd.f32 %v527, %v528
        %v530 = vsel %vm484, %v465, 0.0
        %v531 = vadd.f32 %v529, %v530
        %v532 = vsel %vm484, %v466, 0.0
        %v533 = vadd.f32 %v531, %v532
        %v534 = vsel %vm484, %v467, 0.0
        %v535 = vadd.f32 %v533, %v534
        %v536 = vsel %vm484, %v468, 0.0
        %v537 = vadd.f32 %v535, %v536
        %v538 = vsel %vm484, %v469, 0.0
        %v539 = vadd.f32 %v537, %v538
        %v540 = vsel %vm484, %v470, 0.0
        %v541 = vadd.f32 %v539, %v540
        %v542 = vsel %vm484, %v471, 0.0
        %v543 = vadd.f32 %v541, %v542
        %v544 = vsel %vm484, %v472, 0.0
        %v545 = vadd.f32 %v543, %v544
        %v546 = vsel %vm484, %v473, 0.0
        %v547 = vadd.f32 %v545, %v546
        %v548 = vrot.slane %v547, 4
        %v549 = vadd.f32 %v547, %v548
        %v550 = vrot.slane %v549, 2
        %v551 = vadd.f32 %v549, %v550
        %v552 = vrot.slane %v551, 1
        %v553 = vadd.f32 %v551, %v552
        %v555 = vsel %vm484, %v553, 0
        %557 = vmatprep.subr.mxu0 0.0
        %558 = vmatpush1.msra.mxu0 %v476
        %559 = vmatprep.subr.mxu0 0.0
        %560 = vmatpush1.msra.mxu0 %v477
        %561 = vmatprep.subr.mxu0 0.0
        %562 = vmatpush1.msra.mxu0 %v478
        %563 = vmatprep.subr.mxu0 0.0
        %564 = vmatpush1.msra.mxu0 %v479
        %565 = vmatprep.subr.mxu0 0.0
        %566 = vmatpush1.msra.mxu0 %v480
        %567 = vmatprep.subr.mxu0 0.0
        %568 = vmatpush1.msra.mxu0 %v481
        %569 = vmatprep.subr.mxu0 0.0
        %570 = vmatpush1.msra.mxu0 %v482
        %571 = vmatprep.subr.mxu0 0.0
        %572 = vmatpush1.msra.mxu0 %v483
        %573 = vmatprep.subr.mxu0 0.0
        %574 = vmatpush1.msra.mxu0 0.0
        %575 = vmatprep.subr.mxu0 0.0
        %576 = vmatpush1.msra.mxu0 0.0
        %577 = vmatprep.subr.mxu0 0.0
        %578 = vmatpush1.msra.mxu0 0.0
        %579 = vmatprep.subr.mxu0 0.0
        %580 = vmatpush1.msra.mxu0 0.0
        %581 = vmatprep.subr.mxu0 0.0
        %582 = vmatpush1.msra.mxu0 0.0
        %583 = vmatprep.subr.mxu0 0.0
        %584 = vmatpush1.msra.mxu0 0.0
        %585 = vmatprep.subr.mxu0 0.0
        %586 = vmatpush1.msra.mxu0 0.0
        %587 = vmatprep.subr.mxu0 0.0
        %588 = vmatpush1.msra.mxu0 0.0
        %589 = vmatprep.subr.mxu0 0.0
        %590 = vmatpush1.msra.mxu0 0.0
        %591 = vmatprep.subr.mxu0 0.0
        %592 = vmatpush1.msra.mxu0 0.0
        %593 = vmatprep.subr.mxu0 0.0
        %594 = vmatpush1.msra.mxu0 0.0
        %595 = vmatprep.subr.mxu0 0.0
        %596 = vmatpush1.msra.mxu0 0.0
        %597 = vmatprep.subr.mxu0 0.0
        %598 = vmatpush1.msra.mxu0 0.0
        %599 = vmatprep.subr.mxu0 0.0
        %600 = vmatpush1.msra.mxu0 0.0
        %601 = vmatprep.subr.mxu0 0.0
        %602 = vmatpush1.msra.mxu0 0.0
        %603 = vmatprep.subr.mxu0 0.0
        %604 = vmatpush1.msra.mxu0 0.0
        %605 = vmatprep.subr.mxu0 0.0
        %606 = vmatpush1.msra.mxu0 0.0
        %607 = vmatprep.subr.mxu0 0.0
        %608 = vmatpush1.msra.mxu0 0.0
        %609 = vmatprep.subr.mxu0 0.0
        %610 = vmatpush1.msra.mxu0 0.0
        %611 = vmatprep.subr.mxu0 0.0
        %612 = vmatpush1.msra.mxu0 0.0
        %613 = vmatprep.subr.mxu0 0.0
        %614 = vmatpush1.msra.mxu0 0.0
        %615 = vmatprep.subr.mxu0 0.0
        %616 = vmatpush1.msra.mxu0 0.0
        %617 = vmatprep.subr.mxu0 0.0
        %618 = vmatpush1.msra.mxu0 0.0
        %619 = vmatprep.subr.mxu0 0.0
        %620 = vmatpush1.msra.mxu0 0.0
        %621 = vmatprep.mubr.f32.mxu0 0.0
        %622 = vmatmul.mubr.f32.gmra.mrb[0].mxu0 %v555
        %v623 = vpop.f32.mrb[0].mxu0
        %v624 = vadd.f32 0.0, %v623
        %v625 = vpop.f32.mrb[0].mxu0
        %626 = vdwg.mxu0
        %v627 = vlaneseq
        %v628 = vshrl.u32 %v627, 7
        %v629 = vsub.s32 0, %v628
        %v630 = vrot.slane %v624, %v629
        %v631 = vsub.f32 %v442, %v630
        %v632 = vsub.f32 %v443, %v630
        %v633 = vsub.f32 %v444, %v630
        %v634 = vsub.f32 %v445, %v630
        %v635 = vsub.f32 %v446, %v630
        %v636 = vsub.f32 %v447, %v630
        %v637 = vsub.f32 %v448, %v630
        %v638 = vsub.f32 %v449, %v630
        %v639 = vsub.f32 %v450, %v630
        %v640 = vsub.f32 %v451, %v630
        %v641 = vsub.f32 %v452, %v630
        %v642 = vsub.f32 %v453, %v630
        %v643 = vsub.f32 %v454, %v630
        %v644 = vsub.f32 %v455, %v630
        %v645 = vsub.f32 %v456, %v630
        %v646 = vsub.f32 %v457, %v630
        %v647 = vsub.f32 %v458, %v630
        %v648 = vsub.f32 %v459, %v630
        %v649 = vsub.f32 %v460, %v630
        %v650 = vsub.f32 %v461, %v630
        %v651 = vsub.f32 %v462, %v630
        %v652 = vsub.f32 %v463, %v630
        %v653 = vsub.f32 %v464, %v630
        %v654 = vsub.f32 %v465, %v630
        %v655 = vsub.f32 %v466, %v630
        %v656 = vsub.f32 %v467, %v630
        %v657 = vsub.f32 %v468, %v630
        %v658 = vsub.f32 %v469, %v630
        %v659 = vsub.f32 %v470, %v630
        %v660 = vsub.f32 %v471, %v630
        %v661 = vsub.f32 %v472, %v630
        %v662 = vsub.f32 %v473, %v630
        %v663 = vmul.f32 %v631, %v631
        %v664 = vmul.f32 %v632, %v632
        %v665 = vmul.f32 %v633, %v633
        %v666 = vmul.f32 %v634, %v634
        %v667 = vmul.f32 %v635, %v635
        %v668 = vmul.f32 %v636, %v636
        %v669 = vmul.f32 %v637, %v637
        %v670 = vmul.f32 %v638, %v638
        %v671 = vmul.f32 %v639, %v639
        %v672 = vmul.f32 %v640, %v640
        %v673 = vmul.f32 %v641, %v641
        %v674 = vmul.f32 %v642, %v642
        %v675 = vmul.f32 %v643, %v643
        %v676 = vmul.f32 %v644, %v644
        %v677 = vmul.f32 %v645, %v645
        %v678 = vmul.f32 %v646, %v646
        %v679 = vmul.f32 %v647, %v647
        %v680 = vmul.f32 %v648, %v648
        %v681 = vmul.f32 %v649, %v649
        %v682 = vmul.f32 %v650, %v650
        %v683 = vmul.f32 %v651, %v651
        %v684 = vmul.f32 %v652, %v652
        %v685 = vmul.f32 %v653, %v653
        %v686 = vmul.f32 %v654, %v654
        %v687 = vmul.f32 %v655, %v655
        %v688 = vmul.f32 %v656, %v656
        %v689 = vmul.f32 %v657, %v657
        %v690 = vmul.f32 %v658, %v658
        %v691 = vmul.f32 %v659, %v659
        %v692 = vmul.f32 %v660, %v660
        %v693 = vmul.f32 %v661, %v661
        %v694 = vmul.f32 %v662, %v662
        %v695 = vsel %vm484, %v663, 0.0
        %v696 = vsel %vm484, %v664, 0.0
        %v697 = vadd.f32 %v695, %v696
        %v698 = vsel %vm484, %v665, 0.0
        %v699 = vadd.f32 %v697, %v698
        %v700 = vsel %vm484, %v666, 0.0
        %v701 = vadd.f32 %v699, %v700
        %v702 = vsel %vm484, %v667, 0.0
        %v703 = vadd.f32 %v701, %v702
        %v704 = vsel %vm484, %v668, 0.0
        %v705 = vadd.f32 %v703, %v704
        %v706 = vsel %vm484, %v669, 0.0
        %v707 = vadd.f32 %v705, %v706
        %v708 = vsel %vm484, %v670, 0.0
        %v709 = vadd.f32 %v707, %v708
        %v710 = vsel %vm484, %v671, 0.0
        %v711 = vadd.f32 %v709, %v710
        %v712 = vsel %vm484, %v672, 0.0
        %v713 = vadd.f32 %v711, %v712
        %v714 = vsel %vm484, %v673, 0.0
        %v715 = vadd.f32 %v713, %v714
        %v716 = vsel %vm484, %v674, 0.0
        %v717 = vadd.f32 %v715, %v716
        %v718 = vsel %vm484, %v675, 0.0
        %v719 = vadd.f32 %v717, %v718
        %v720 = vsel %vm484, %v676, 0.0
        %v721 = vadd.f32 %v719, %v720
        %v722 = vsel %vm484, %v677, 0.0
        %v723 = vadd.f32 %v721, %v722
        %v724 = vsel %vm484, %v678, 0.0
        %v725 = vadd.f32 %v723, %v724
        %v726 = vsel %vm484, %v679, 0.0
        %v727 = vadd.f32 %v725, %v726
        %v728 = vsel %vm484, %v680, 0.0
        %v729 = vadd.f32 %v727, %v728
        %v730 = vsel %vm484, %v681, 0.0
        %v731 = vadd.f32 %v729, %v730
        %v732 = vsel %vm484, %v682, 0.0
        %v733 = vadd.f32 %v731, %v732
        %v734 = vsel %vm484, %v683, 0.0
        %v735 = vadd.f32 %v733, %v734
        %v736 = vsel %vm484, %v684, 0.0
        %v737 = vadd.f32 %v735, %v736
        %v738 = vsel %vm484, %v685, 0.0
        %v739 = vadd.f32 %v737, %v738
        %v740 = vsel %vm484, %v686, 0.0
        %v741 = vadd.f32 %v739, %v740
        %v742 = vsel %vm484, %v687, 0.0
        %v743 = vadd.f32 %v741, %v742
        %v744 = vsel %vm484, %v688, 0.0
        %v745 = vadd.f32 %v743, %v744
        %v746 = vsel %vm484, %v689, 0.0
        %v747 = vadd.f32 %v745, %v746
        %v748 = vsel %vm484, %v690, 0.0
        %v749 = vadd.f32 %v747, %v748
        %v750 = vsel %vm484, %v691, 0.0
        %v751 = vadd.f32 %v749, %v750
        %v752 = vsel %vm484, %v692, 0.0
        %v753 = vadd.f32 %v751, %v752
        %v754 = vsel %vm484, %v693, 0.0
        %v755 = vadd.f32 %v753, %v754
        %v756 = vsel %vm484, %v694, 0.0
        %v757 = vadd.f32 %v755, %v756
        %v758 = vrot.slane %v757, 4
        %v759 = vadd.f32 %v757, %v758
        %v760 = vrot.slane %v759, 2
        %v761 = vadd.f32 %v759, %v760
        %v762 = vrot.slane %v761, 1
        %v763 = vadd.f32 %v761, %v762
        %v765 = vsel %vm484, %v763, 0
        %767 = vmatprep.subr.mxu0 0.0
        %768 = vmatpush1.msra.mxu0 %v476
        %769 = vmatprep.subr.mxu0 0.0
        %770 = vmatpush1.msra.mxu0 %v477
        %771 = vmatprep.subr.mxu0 0.0
        %772 = vmatpush1.msra.mxu0 %v478
        %773 = vmatprep.subr.mxu0 0.0
        %774 = vmatpush1.msra.mxu0 %v479
        %775 = vmatprep.subr.mxu0 0.0
        %776 = vmatpush1.msra.mxu0 %v480
        %777 = vmatprep.subr.mxu0 0.0
        %778 = vmatpush1.msra.mxu0 %v481
        %779 = vmatprep.subr.mxu0 0.0
        %780 = vmatpush1.msra.mxu0 %v482
        %781 = vmatprep.subr.mxu0 0.0
        %782 = vmatpush1.msra.mxu0 %v483
        %783 = vmatprep.subr.mxu0 0.0
        %784 = vmatpush1.msra.mxu0 0.0
        %785 = vmatprep.subr.mxu0 0.0
        %786 = vmatpush1.msra.mxu0 0.0
        %787 = vmatprep.subr.mxu0 0.0
        %788 = vmatpush1.msra.mxu0 0.0
        %789 = vmatprep.subr.mxu0 0.0
        %790 = vmatpush1.msra.mxu0 0.0
        %791 = vmatprep.subr.mxu0 0.0
        %792 = vmatpush1.msra.mxu0 0.0
        %793 = vmatprep.subr.mxu0 0.0
        %794 = vmatpush1.msra.mxu0 0.0
        %795 = vmatprep.subr.mxu0 0.0
        %796 = vmatpush1.msra.mxu0 0.0
        %797 = vmatprep.subr.mxu0 0.0
        %798 = vmatpush1.msra.mxu0 0.0
        %799 = vmatprep.subr.mxu0 0.0
        %800 = vmatpush1.msra.mxu0 0.0
        %801 = vmatprep.subr.mxu0 0.0
        %802 = vmatpush1.msra.mxu0 0.0
        %803 = vmatprep.subr.mxu0 0.0
        %804 = vmatpush1.msra.mxu0 0.0
        %805 = vmatprep.subr.mxu0 0.0
        %806 = vmatpush1.msra.mxu0 0.0
        %807 = vmatprep.subr.mxu0 0.0
        %808 = vmatpush1.msra.mxu0 0.0
        %809 = vmatprep.subr.mxu0 0.0
        %810 = vmatpush1.msra.mxu0 0.0
        %811 = vmatprep.subr.mxu0 0.0
        %812 = vmatpush1.msra.mxu0 0.0
        %813 = vmatprep.subr.mxu0 0.0
        %814 = vmatpush1.msra.mxu0 0.0
        %815 = vmatprep.subr.mxu0 0.0
        %816 = vmatpush1.msra.mxu0 0.0
        %817 = vmatprep.subr.mxu0 0.0
        %818 = vmatpush1.msra.mxu0 0.0
        %819 = vmatprep.subr.mxu0 0.0
        %820 = vmatpush1.msra.mxu0 0.0
        %821 = vmatprep.subr.mxu0 0.0
        %822 = vmatpush1.msra.mxu0 0.0
        %823 = vmatprep.subr.mxu0 0.0
        %824 = vmatpush1.msra.mxu0 0.0
        %825 = vmatprep.subr.mxu0 0.0
        %826 = vmatpush1.msra.mxu0 0.0
        %827 = vmatprep.subr.mxu0 0.0
        %828 = vmatpush1.msra.mxu0 0.0
        %829 = vmatprep.subr.mxu0 0.0
        %830 = vmatpush1.msra.mxu0 0.0
        %831 = vmatprep.mubr.f32.mxu0 0.0
        %832 = vmatmul.mubr.f32.gmra.mrb[0].mxu0 %v765
        %v833 = vpop.f32.mrb[0].mxu0
        %v834 = vadd.f32 1e-06, %v833
        %v835 = vpop.f32.mrb[0].mxu0
        %836 = vdwg.mxu0
        %v837 = vrsqrt.pop %v834
        %vm838 = vcmask 516096
        %839 = vst.msk [vmem:[#allocation4] sm:$0x1] %vm838, %v624
        %840 = vst.msk [vmem:[#allocation5] sm:$0x1] %vm838, %v837
        %v841 = vmul.f32 %v837, %v474
        %v842 = vlaneseq
        %v843 = vshrl.u32 %v842, 7
        %v844 = vsub.s32 0, %v843
        %v845 = vrot.slane %v841, %v844
        %v846 = vmul.f32 %v631, %v845
        %v847 = vmul.f32 %v632, %v845
        %v848 = vmul.f32 %v633, %v845
        %v849 = vmul.f32 %v634, %v845
        %v850 = vmul.f32 %v635, %v845
        %v851 = vmul.f32 %v636, %v845
        %v852 = vmul.f32 %v637, %v845
        %v853 = vmul.f32 %v638, %v845
        %v854 = vmul.f32 %v639, %v845
        %v855 = vmul.f32 %v640, %v845
        %v856 = vmul.f32 %v641, %v845
        %v857 = vmul.f32 %v642, %v845
        %v858 = vmul.f32 %v643, %v845
        %v859 = vmul.f32 %v644, %v845
        %v860 = vmul.f32 %v645, %v845
        %v861 = vmul.f32 %v646, %v845
        %v862 = vmul.f32 %v647, %v845
        %v863 = vmul.f32 %v648, %v845
        %v864 = vmul.f32 %v649, %v845
        %v865 = vmul.f32 %v650, %v845
        %v866 = vmul.f32 %v651, %v845
        %v867 = vmul.f32 %v652, %v845
        %v868 = vmul.f32 %v653, %v845
        %v869 = vmul.f32 %v654, %v845
        %v870 = vmul.f32 %v655, %v845
        %v871 = vmul.f32 %v656, %v845
        %v872 = vmul.f32 %v657, %v845
        %v873 = vmul.f32 %v658, %v845
        %v874 = vmul.f32 %v659, %v845
        %v875 = vmul.f32 %v660, %v845
        %v876 = vmul.f32 %v661, %v845
        %v877 = vmul.f32 %v662, %v845
        %v879 = vlaneseq
        %v880 = vshrl.u32 %v879, 7
        %v881 = vsub.s32 0, %v880
        %v882 = vrot.slane %v475, %v881
        %v884 = vadd.f32 %v846, %v882
        %v885 = vadd.f32 %v847, %v882
        %v886 = vadd.f32 %v848, %v882
        %v887 = vadd.f32 %v849, %v882
        %v888 = vadd.f32 %v850, %v882
        %v889 = vadd.f32 %v851, %v882
        %v890 = vadd.f32 %v852, %v882
        %v891 = vadd.f32 %v853, %v882
        %v892 = vadd.f32 %v854, %v882
        %v893 = vadd.f32 %v855, %v882
        %v894 = vadd.f32 %v856, %v882
        %v895 = vadd.f32 %v857, %v882
        %v896 = vadd.f32 %v858, %v882
        %v897 = vadd.f32 %v859, %v882
        %v898 = vadd.f32 %v860, %v882
        %v899 = vadd.f32 %v861, %v882
        %v900 = vadd.f32 %v862, %v882
        %v901 = vadd.f32 %v863, %v882
        %v902 = vadd.f32 %v864, %v882
        %v903 = vadd.f32 %v865, %v882
        %v904 = vadd.f32 %v866, %v882
        %v905 = vadd.f32 %v867, %v882
        %v906 = vadd.f32 %v868, %v882
        %v907 = vadd.f32 %v869, %v882
        %v908 = vadd.f32 %v870, %v882
        %v909 = vadd.f32 %v871, %v882
        %v910 = vadd.f32 %v872, %v882
        %v911 = vadd.f32 %v873, %v882
        %v912 = vadd.f32 %v874, %v882
        %v913 = vadd.f32 %v875, %v882
        %v914 = vadd.f32 %v876, %v882
        %v915 = vadd.f32 %v877, %v882
        %v916 = vpack.c.bf16 %v885, %v884
        %v917 = vpack.c.bf16 %v887, %v886
        %v918 = vpack.c.bf16 %v889, %v888
        %v919 = vpack.c.bf16 %v891, %v890
        %v920 = vpack.c.bf16 %v893, %v892
        %v921 = vpack.c.bf16 %v895, %v894
        %v922 = vpack.c.bf16 %v897, %v896
        %v923 = vpack.c.bf16 %v899, %v898
        %v924 = vpack.c.bf16 %v901, %v900
        %v925 = vpack.c.bf16 %v903, %v902
        %v926 = vpack.c.bf16 %v905, %v904
        %v927 = vpack.c.bf16 %v907, %v906
        %v928 = vpack.c.bf16 %v909, %v908
        %v929 = vpack.c.bf16 %v911, %v910
        %v930 = vpack.c.bf16 %v913, %v912
        %v931 = vpack.c.bf16 %v915, %v914
        %v932 = vld [vmem:[%s6] sm:$0xf]
        %v933 = vld [vmem:[%s6 + $0x4] sm:$0xf]
        %v934 = vld [vmem:[%s6 + $0x8] sm:$0xf]
        %v935 = vld [vmem:[%s6 + $0xc] sm:$0xf]
        %v936 = vld [vmem:[%s6 + $0x10] sm:$0xf]
        %v937 = vld [vmem:[%s6 + $0x14] sm:$0xf]
        %v938 = vld [vmem:[%s6 + $0x18] sm:$0xf]
        %v939 = vld [vmem:[%s6 + $0x1c] sm:$0xf]
        %v940 = vld [vmem:[%s7] sm:$0x1]
        %v942 = vlaneseq
        %v943 = vshrl.u32 %v942, 7
        %v944 = vsub.s32 0, %v943
        %v945 = vrot.slane %v940, %v944
        %v955 = vunpack.c.l.b16 %v932
        %v956 = vunpack.c.l.b16 %v933
        %v957 = vunpack.c.l.b16 %v934
        %v958 = vunpack.c.l.b16 %v935
        %v959 = vunpack.c.l.b16 %v936
        %v960 = vunpack.c.l.b16 %v937
        %v961 = vunpack.c.l.b16 %v938
        %v962 = vunpack.c.l.b16 %v939
        %v963 = vpack.c.b16 %v956, %v955
        %v964 = vpack.c.b16 %v958, %v957
        %v965 = vpack.c.b16 %v960, %v959
        %v966 = vpack.c.b16 %v962, %v961
        %v972 = vsel %vm484, %v916, 0
        %v975 = vsel %vm484, %v917, 0
        %v978 = vsel %vm484, %v918, 0
        %v981 = vsel %vm484, %v919, 0
        %v984 = vsel %vm484, %v920, 0
        %v987 = vsel %vm484, %v921, 0
        %v990 = vsel %vm484, %v922, 0
        %v993 = vsel %vm484, %v923, 0
        %v996 = vsel %vm484, %v924, 0
        %v999 = vsel %vm484, %v925, 0
        %v1002 = vsel %vm484, %v926, 0
        %v1005 = vsel %vm484, %v927, 0
        %v1008 = vsel %vm484, %v928, 0
        %v1011 = vsel %vm484, %v929, 0
        %v1014 = vsel %vm484, %v930, 0
        %v1017 = vsel %vm484, %v931, 0
        %1019 = vmatprep.subr.bf16.mxu0 0
        %1020 = vmatpush1.bf16.msra.mxu0 %v963
        %1021 = vmatprep.subr.bf16.mxu0 0
        %1022 = vmatpush1.bf16.msra.mxu0 %v964
        %1023 = vmatprep.subr.bf16.mxu0 0
        %1024 = vmatpush1.bf16.msra.mxu0 %v965
        %1025 = vmatprep.subr.bf16.mxu0 0
        %1026 = vmatpush1.bf16.msra.mxu0 %v966
        %1027 = vmatprep.subr.bf16.mxu0 0
        %1028 = vmatpush1.bf16.msra.mxu0 0
        %1029 = vmatprep.subr.bf16.mxu0 0
        %1030 = vmatpush1.bf16.msra.mxu0 0
        %1031 = vmatprep.subr.bf16.mxu0 0
        %1032 = vmatpush1.bf16.msra.mxu0 0
        %1033 = vmatprep.subr.bf16.mxu0 0
        %1034 = vmatpush1.bf16.msra.mxu0 0
        %1035 = vmatprep.subr.bf16.mxu0 0
        %1036 = vmatpush1.bf16.msra.mxu0 0
        %1037 = vmatprep.subr.bf16.mxu0 0
        %1038 = vmatpush1.bf16.msra.mxu0 0
        %1039 = vmatprep.subr.bf16.mxu0 0
        %1040 = vmatpush1.bf16.msra.mxu0 0
        %1041 = vmatprep.subr.bf16.mxu0 0
        %1042 = vmatpush1.bf16.msra.mxu0 0
        %1043 = vmatprep.subr.bf16.mxu0 0
        %1044 = vmatpush1.bf16.msra.mxu0 0
        %1045 = vmatprep.subr.bf16.mxu0 0
        %1046 = vmatpush1.bf16.msra.mxu0 0
        %1047 = vmatprep.subr.bf16.mxu0 0
        %1048 = vmatpush1.bf16.msra.mxu0 0
        %1049 = vmatprep.subr.bf16.mxu0 0
        %1050 = vmatpush1.bf16.msra.mxu0 0
        %1051 = vmatprep.mubr.bf16.mxu0 0
        %1052 = vmatmul.mubr.bf16.gmra.mrb[0].mxu0 %v972
        %v1053 = vpop.f32.mrb[0].mxu0
        %v1054 = vadd.f32 %v945, %v1053
        %v1055 = vpop.f32.mrb[0].mxu0
        %v1056 = vpop.f32.mrb[0].mxu0
        %v1057 = vadd.f32 %v945, %v1056
        %v1058 = vpop.f32.mrb[0].mxu0
        %1059 = vmatprep.mubr.bf16.mxu0 0
        %1060 = vmatmul.mubr.bf16.gmra.mrb[0].mxu0 %v975
        %v1061 = vpop.f32.mrb[0].mxu0
        %v1062 = vadd.f32 %v945, %v1061
        %v1063 = vpop.f32.mrb[0].mxu0
        %v1064 = vpop.f32.mrb[0].mxu0
        %v1065 = vadd.f32 %v945, %v1064
        %v1066 = vpop.f32.mrb[0].mxu0
        %1067 = vmatprep.mubr.bf16.mxu0 0
        %1068 = vmatmul.mubr.bf16.gmra.mrb[0].mxu0 %v978
        %v1069 = vpop.f32.mrb[0].mxu0
        %v1070 = vadd.f32 %v945, %v1069
        %v1071 = vpop.f32.mrb[0].mxu0
        %v1072 = vpop.f32.mrb[0].mxu0
        %v1073 = vadd.f32 %v945, %v1072
        %v1074 = vpop.f32.mrb[0].mxu0
        %1075 = vmatprep.mubr.bf16.mxu0 0
        %1076 = vmatmul.mubr.bf16.gmra.mrb[0].mxu0 %v981
        %v1077 = vpop.f32.mrb[0].mxu0
        %v1078 = vadd.f32 %v945, %v1077
        %v1079 = vpop.f32.mrb[0].mxu0
        %v1080 = vpop.f32.mrb[0].mxu0
        %v1081 = vadd.f32 %v945, %v1080
        %v1082 = vpop.f32.mrb[0].mxu0
        %1083 = vmatprep.mubr.bf16.mxu0 0
        %1084 = vmatmul.mubr.bf16.gmra.mrb[0].mxu0 %v984
        %v1085 = vpop.f32.mrb[0].mxu0
        %v1086 = vadd.f32 %v945, %v1085
        %v1087 = vpop.f32.mrb[0].mxu0
        %v1088 = vpop.f32.mrb[0].mxu0
        %v1089 = vadd.f32 %v945, %v1088
        %v1090 = vpop.f32.mrb[0].mxu0
        %1091 = vmatprep.mubr.bf16.mxu0 0
        %1092 = vmatmul.mubr.bf16.gmra.mrb[0].mxu0 %v987
        %v1093 = vpop.f32.mrb[0].mxu0
        %v1094 = vadd.f32 %v945, %v1093
        %v1095 = vpop.f32.mrb[0].mxu0
        %v1096 = vpop.f32.mrb[0].mxu0
        %v1097 = vadd.f32 %v945, %v1096
        %v1098 = vpop.f32.mrb[0].mxu0
        %1099 = vmatprep.mubr.bf16.mxu0 0
        %1100 = vmatmul.mubr.bf16.gmra.mrb[0].mxu0 %v990
        %v1101 = vpop.f32.mrb[0].mxu0
        %v1102 = vadd.f32 %v945, %v1101
        %v1103 = vpop.f32.mrb[0].mxu0
        %v1104 = vpop.f32.mrb[0].mxu0
        %v1105 = vadd.f32 %v945, %v1104
        %v1106 = vpop.f32.mrb[0].mxu0
        %1107 = vmatprep.mubr.bf16.mxu0 0
        %1108 = vmatmul.mubr.bf16.gmra.mrb[0].mxu0 %v993
        %v1109 = vpop.f32.mrb[0].mxu0
        %v1110 = vadd.f32 %v945, %v1109
        %v1111 = vpop.f32.mrb[0].mxu0
        %v1112 = vpop.f32.mrb[0].mxu0
        %v1113 = vadd.f32 %v945, %v1112
        %v1114 = vpop.f32.mrb[0].mxu0
        %1115 = vmatprep.mubr.bf16.mxu0 0
        %1116 = vmatmul.mubr.bf16.gmra.mrb[0].mxu0 %v996
        %v1117 = vpop.f32.mrb[0].mxu0
        %v1118 = vadd.f32 %v945, %v1117
        %v1119 = vpop.f32.mrb[0].mxu0
        %v1120 = vpop.f32.mrb[0].mxu0
        %v1121 = vadd.f32 %v945, %v1120
        %v1122 = vpop.f32.mrb[0].mxu0
        %1123 = vmatprep.mubr.bf16.mxu0 0
        %1124 = vmatmul.mubr.bf16.gmra.mrb[0].mxu0 %v999
        %v1125 = vpop.f32.mrb[0].mxu0
        %v1126 = vadd.f32 %v945, %v1125
        %v1127 = vpop.f32.mrb[0].mxu0
        %v1128 = vpop.f32.mrb[0].mxu0
        %v1129 = vadd.f32 %v945, %v1128
        %v1130 = vpop.f32.mrb[0].mxu0
        %1131 = vmatprep.mubr.bf16.mxu0 0
        %1132 = vmatmul.mubr.bf16.gmra.mrb[0].mxu0 %v1002
        %v1133 = vpop.f32.mrb[0].mxu0
        %v1134 = vadd.f32 %v945, %v1133
        %v1135 = vpop.f32.mrb[0].mxu0
        %v1136 = vpop.f32.mrb[0].mxu0
        %v1137 = vadd.f32 %v945, %v1136
        %v1138 = vpop.f32.mrb[0].mxu0
        %1139 = vmatprep.mubr.bf16.mxu0 0
        %1140 = vmatmul.mubr.bf16.gmra.mrb[0].mxu0 %v1005
        %v1141 = vpop.f32.mrb[0].mxu0
        %v1142 = vadd.f32 %v945, %v1141
        %v1143 = vpop.f32.mrb[0].mxu0
        %v1144 = vpop.f32.mrb[0].mxu0
        %v1145 = vadd.f32 %v945, %v1144
        %v1146 = vpop.f32.mrb[0].mxu0
        %1147 = vmatprep.mubr.bf16.mxu0 0
        %1148 = vmatmul.mubr.bf16.gmra.mrb[0].mxu0 %v1008
        %v1149 = vpop.f32.mrb[0].mxu0
        %v1150 = vadd.f32 %v945, %v1149
        %v1151 = vpop.f32.mrb[0].mxu0
        %v1152 = vpop.f32.mrb[0].mxu0
        %v1153 = vadd.f32 %v945, %v1152
        %v1154 = vpop.f32.mrb[0].mxu0
        %1155 = vmatprep.mubr.bf16.mxu0 0
        %1156 = vmatmul.mubr.bf16.gmra.mrb[0].mxu0 %v1011
        %v1157 = vpop.f32.mrb[0].mxu0
        %v1158 = vadd.f32 %v945, %v1157
        %v1159 = vpop.f32.mrb[0].mxu0
        %v1160 = vpop.f32.mrb[0].mxu0
        %v1161 = vadd.f32 %v945, %v1160
        %v1162 = vpop.f32.mrb[0].mxu0
        %1163 = vmatprep.mubr.bf16.mxu0 0
        %1164 = vmatmul.mubr.bf16.gmra.mrb[0].mxu0 %v1014
        %v1165 = vpop.f32.mrb[0].mxu0
        %v1166 = vadd.f32 %v945, %v1165
        %v1167 = vpop.f32.mrb[0].mxu0
        %v1168 = vpop.f32.mrb[0].mxu0
        %v1169 = vadd.f32 %v945, %v1168
        %v1170 = vpop.f32.mrb[0].mxu0
        %1171 = vmatprep.mubr.bf16.mxu0 0
        %1172 = vmatmul.mubr.bf16.gmra.mrb[0].mxu0 %v1017
        %v1173 = vpop.f32.mrb[0].mxu0
        %v1174 = vadd.f32 %v945, %v1173
        %v1175 = vpop.f32.mrb[0].mxu0
        %v1176 = vpop.f32.mrb[0].mxu0
        %v1177 = vadd.f32 %v945, %v1176
        %v1178 = vpop.f32.mrb[0].mxu0
        %1179 = vdwg.mxu0
        %v1180 = vpack.c.bf16 %v1057, %v1054
        %v1181 = vpack.c.bf16 %v1065, %v1062
        %v1182 = vpack.c.bf16 %v1073, %v1070
        %v1183 = vpack.c.bf16 %v1081, %v1078
        %v1184 = vpack.c.bf16 %v1089, %v1086
        %v1185 = vpack.c.bf16 %v1097, %v1094
        %v1186 = vpack.c.bf16 %v1105, %v1102
        %v1187 = vpack.c.bf16 %v1113, %v1110
        %v1188 = vpack.c.bf16 %v1121, %v1118
        %v1189 = vpack.c.bf16 %v1129, %v1126
        %v1190 = vpack.c.bf16 %v1137, %v1134
        %v1191 = vpack.c.bf16 %v1145, %v1142
        %v1192 = vpack.c.bf16 %v1153, %v1150
        %v1193 = vpack.c.bf16 %v1161, %v1158
        %v1194 = vpack.c.bf16 %v1169, %v1166
        %v1195 = vpack.c.bf16 %v1177, %v1174
        %1196 = vst.msk [vmem:[#allocation2] sm:$0xff] %vm484, %v1180
        %1197 = vst.msk [vmem:[#allocation2 + $0x8] sm:$0xff] %vm484, %v1181
        %1198 = vst.msk [vmem:[#allocation2 + $0x10] sm:$0xff] %vm484, %v1182
        %1199 = vst.msk [vmem:[#allocation2 + $0x18] sm:$0xff] %vm484, %v1183
        %1200 = vst.msk [vmem:[#allocation2 + $0x20] sm:$0xff] %vm484, %v1184
        %1201 = vst.msk [vmem:[#allocation2 + $0x28] sm:$0xff] %vm484, %v1185
        %1202 = vst.msk [vmem:[#allocation2 + $0x30] sm:$0xff] %vm484, %v1186
        %1203 = vst.msk [vmem:[#allocation2 + $0x38] sm:$0xff] %vm484, %v1187
        %1204 = vst.msk [vmem:[#allocation2 + $0x40] sm:$0xff] %vm484, %v1188
        %1205 = vst.msk [vmem:[#allocation2 + $0x48] sm:$0xff] %vm484, %v1189
        %1206 = vst.msk [vmem:[#allocation2 + $0x50] sm:$0xff] %vm484, %v1190
        %1207 = vst.msk [vmem:[#allocation2 + $0x58] sm:$0xff] %vm484, %v1191
        %1208 = vst.msk [vmem:[#allocation2 + $0x60] sm:$0xff] %vm484, %v1192
        %1209 = vst.msk [vmem:[#allocation2 + $0x68] sm:$0xff] %vm484, %v1193
        %1210 = vst.msk [vmem:[#allocation2 + $0x70] sm:$0xff] %vm484, %v1194
        %1211 = vst.msk [vmem:[#allocation2 + $0x78] sm:$0xff] %vm484, %v1195
        %v1212 = vld [vmem:[%s8] sm:$0xf]
        %v1213 = vld [vmem:[%s8 + $0x4] sm:$0xf]
        %v1214 = vld [vmem:[%s8 + $0x8] sm:$0xf]
        %v1215 = vld [vmem:[%s8 + $0xc] sm:$0xf]
        %v1216 = vld [vmem:[%s8 + $0x10] sm:$0xf]
        %v1217 = vld [vmem:[%s8 + $0x14] sm:$0xf]
        %v1218 = vld [vmem:[%s8 + $0x18] sm:$0xf]
        %v1219 = vld [vmem:[%s8 + $0x1c] sm:$0xf]
        %v1220 = vld [vmem:[%s9] sm:$0x1]
        %v1222 = vlaneseq
        %v1223 = vshrl.u32 %v1222, 7
        %v1224 = vsub.s32 0, %v1223
        %v1225 = vrot.slane %v1220, %v1224
        %v1235 = vunpack.c.l.b16 %v1212
        %v1236 = vunpack.c.l.b16 %v1213
        %v1237 = vunpack.c.l.b16 %v1214
        %v1238 = vunpack.c.l.b16 %v1215
        %v1239 = vunpack.c.l.b16 %v1216
        %v1240 = vunpack.c.l.b16 %v1217
        %v1241 = vunpack.c.l.b16 %v1218
        %v1242 = vunpack.c.l.b16 %v1219
        %v1243 = vpack.c.b16 %v1236, %v1235
        %v1244 = vpack.c.b16 %v1238, %v1237
        %v1245 = vpack.c.b16 %v1240, %v1239
        %v1246 = vpack.c.b16 %v1242, %v1241
        %1251 = vmatprep.subr.bf16.mxu0 0
        %1252 = vmatpush1.bf16.msra.mxu0 %v1243
        %1253 = vmatprep.subr.bf16.mxu0 0
        %1254 = vmatpush1.bf16.msra.mxu0 %v1244
        %1255 = vmatprep.subr.bf16.mxu0 0
        %1256 = vmatpush1.bf16.msra.mxu0 %v1245
        %1257 = vmatprep.subr.bf16.mxu0 0
        %1258 = vmatpush1.bf16.msra.mxu0 %v1246
        %1259 = vmatprep.subr.bf16.mxu0 0
        %1260 = vmatpush1.bf16.msra.mxu0 0
        %1261 = vmatprep.subr.bf16.mxu0 0
        %1262 = vmatpush1.bf16.msra.mxu0 0
        %1263 = vmatprep.subr.bf16.mxu0 0
        %1264 = vmatpush1.bf16.msra.mxu0 0
        %1265 = vmatprep.subr.bf16.mxu0 0
        %1266 = vmatpush1.bf16.msra.mxu0 0
        %1267 = vmatprep.subr.bf16.mxu0 0
        %1268 = vmatpush1.bf16.msra.mxu0 0
        %1269 = vmatprep.subr.bf16.mxu0 0
        %1270 = vmatpush1.bf16.msra.mxu0 0
        %1271 = vmatprep.subr.bf16.mxu0 0
        %1272 = vmatpush1.bf16.msra.mxu0 0
        %1273 = vmatprep.subr.bf16.mxu0 0
        %1274 = vmatpush1.bf16.msra.mxu0 0
        %1275 = vmatprep.subr.bf16.mxu0 0
        %1276 = vmatpush1.bf16.msra.mxu0 0
        %1277 = vmatprep.subr.bf16.mxu0 0
        %1278 = vmatpush1.bf16.msra.mxu0 0
        %1279 = vmatprep.subr.bf16.mxu0 0
        %1280 = vmatpush1.bf16.msra.mxu0 0
        %1281 = vmatprep.subr.bf16.mxu0 0
        %1282 = vmatpush1.bf16.msra.mxu0 0
        %1283 = vmatprep.mubr.bf16.mxu0 0
        %1284 = vmatmul.mubr.bf16.gmra.mrb[0].mxu0 %v972
        %v1285 = vpop.f32.mrb[0].mxu0
        %v1286 = vadd.f32 %v1225, %v1285
        %v1287 = vpop.f32.mrb[0].mxu0
        %v1288 = vpop.f32.mrb[0].mxu0
        %v1289 = vadd.f32 %v1225, %v1288
        %v1290 = vpop.f32.mrb[0].mxu0
        %1291 = vmatprep.mubr.bf16.mxu0 0
        %1292 = vmatmul.mubr.bf16.gmra.mrb[0].mxu0 %v975
        %v1293 = vpop.f32.mrb[0].mxu0
        %v1294 = vadd.f32 %v1225, %v1293
        %v1295 = vpop.f32.mrb[0].mxu0
        %v1296 = vpop.f32.mrb[0].mxu0
        %v1297 = vadd.f32 %v1225, %v1296
        %v1298 = vpop.f32.mrb[0].mxu0
        %1299 = vmatprep.mubr.bf16.mxu0 0
        %1300 = vmatmul.mubr.bf16.gmra.mrb[0].mxu0 %v978
        %v1301 = vpop.f32.mrb[0].mxu0
        %v1302 = vadd.f32 %v1225, %v1301
        %v1303 = vpop.f32.mrb[0].mxu0
        %v1304 = vpop.f32.mrb[0].mxu0
        %v1305 = vadd.f32 %v1225, %v1304
        %v1306 = vpop.f32.mrb[0].mxu0
        %1307 = vmatprep.mubr.bf16.mxu0 0
        %1308 = vmatmul.mubr.bf16.gmra.mrb[0].mxu0 %v981
        %v1309 = vpop.f32.mrb[0].mxu0
        %v1310 = vadd.f32 %v1225, %v1309
        %v1311 = vpop.f32.mrb[0].mxu0
        %v1312 = vpop.f32.mrb[0].mxu0
        %v1313 = vadd.f32 %v1225, %v1312
        %v1314 = vpop.f32.mrb[0].mxu0
        %1315 = vmatprep.mubr.bf16.mxu0 0
        %1316 = vmatmul.mubr.bf16.gmra.mrb[0].mxu0 %v984
        %v1317 = vpop.f32.mrb[0].mxu0
        %v1318 = vadd.f32 %v1225, %v1317
        %v1319 = vpop.f32.mrb[0].mxu0
        %v1320 = vpop.f32.mrb[0].mxu0
        %v1321 = vadd.f32 %v1225, %v1320
        %v1322 = vpop.f32.mrb[0].mxu0
        %1323 = vmatprep.mubr.bf16.mxu0 0
        %1324 = vmatmul.mubr.bf16.gmra.mrb[0].mxu0 %v987
        %v1325 = vpop.f32.mrb[0].mxu0
        %v1326 = vadd.f32 %v1225, %v1325
        %v1327 = vpop.f32.mrb[0].mxu0
        %v1328 = vpop.f32.mrb[0].mxu0
        %v1329 = vadd.f32 %v1225, %v1328
        %v1330 = vpop.f32.mrb[0].mxu0
        %1331 = vmatprep.mubr.bf16.mxu0 0
        %1332 = vmatmul.mubr.bf16.gmra.mrb[0].mxu0 %v990
        %v1333 = vpop.f32.mrb[0].mxu0
        %v1334 = vadd.f32 %v1225, %v1333
        %v1335 = vpop.f32.mrb[0].mxu0
        %v1336 = vpop.f32.mrb[0].mxu0
        %v1337 = vadd.f32 %v1225, %v1336
        %v1338 = vpop.f32.mrb[0].mxu0
        %1339 = vmatprep.mubr.bf16.mxu0 0
        %1340 = vmatmul.mubr.bf16.gmra.mrb[0].mxu0 %v993
        %v1341 = vpop.f32.mrb[0].mxu0
        %v1342 = vadd.f32 %v1225, %v1341
        %v1343 = vpop.f32.mrb[0].mxu0
        %v1344 = vpop.f32.mrb[0].mxu0
        %v1345 = vadd.f32 %v1225, %v1344
        %v1346 = vpop.f32.mrb[0].mxu0
        %1347 = vmatprep.mubr.bf16.mxu0 0
        %1348 = vmatmul.mubr.bf16.gmra.mrb[0].mxu0 %v996
        %v1349 = vpop.f32.mrb[0].mxu0
        %v1350 = vadd.f32 %v1225, %v1349
        %v1351 = vpop.f32.mrb[0].mxu0
        %v1352 = vpop.f32.mrb[0].mxu0
        %v1353 = vadd.f32 %v1225, %v1352
        %v1354 = vpop.f32.mrb[0].mxu0
        %1355 = vmatprep.mubr.bf16.mxu0 0
        %1356 = vmatmul.mubr.bf16.gmra.mrb[0].mxu0 %v999
        %v1357 = vpop.f32.mrb[0].mxu0
        %v1358 = vadd.f32 %v1225, %v1357
        %v1359 = vpop.f32.mrb[0].mxu0
        %v1360 = vpop.f32.mrb[0].mxu0
        %v1361 = vadd.f32 %v1225, %v1360
        %v1362 = vpop.f32.mrb[0].mxu0
        %1363 = vmatprep.mubr.bf16.mxu0 0
        %1364 = vmatmul.mubr.bf16.gmra.mrb[0].mxu0 %v1002
        %v1365 = vpop.f32.mrb[0].mxu0
        %v1366 = vadd.f32 %v1225, %v1365
        %v1367 = vpop.f32.mrb[0].mxu0
        %v1368 = vpop.f32.mrb[0].mxu0
        %v1369 = vadd.f32 %v1225, %v1368
        %v1370 = vpop.f32.mrb[0].mxu0
        %1371 = vmatprep.mubr.bf16.mxu0 0
        %1372 = vmatmul.mubr.bf16.gmra.mrb[0].mxu0 %v1005
        %v1373 = vpop.f32.mrb[0].mxu0
        %v1374 = vadd.f32 %v1225, %v1373
        %v1375 = vpop.f32.mrb[0].mxu0
        %v1376 = vpop.f32.mrb[0].mxu0
        %v1377 = vadd.f32 %v1225, %v1376
        %v1378 = vpop.f32.mrb[0].mxu0
        %1379 = vmatprep.mubr.bf16.mxu0 0
        %1380 = vmatmul.mubr.bf16.gmra.mrb[0].mxu0 %v1008
        %v1381 = vpop.f32.mrb[0].mxu0
        %v1382 = vadd.f32 %v1225, %v1381
        %v1383 = vpop.f32.mrb[0].mxu0
        %v1384 = vpop.f32.mrb[0].mxu0
        %v1385 = vadd.f32 %v1225, %v1384
        %v1386 = vpop.f32.mrb[0].mxu0
        %1387 = vmatprep.mubr.bf16.mxu0 0
        %1388 = vmatmul.mubr.bf16.gmra.mrb[0].mxu0 %v1011
        %v1389 = vpop.f32.mrb[0].mxu0
        %v1390 = vadd.f32 %v1225, %v1389
        %v1391 = vpop.f32.mrb[0].mxu0
        %v1392 = vpop.f32.mrb[0].mxu0
        %v1393 = vadd.f32 %v1225, %v1392
        %v1394 = vpop.f32.mrb[0].mxu0
        %1395 = vmatprep.mubr.bf16.mxu0 0
        %1396 = vmatmul.mubr.bf16.gmra.mrb[0].mxu0 %v1014
        %v1397 = vpop.f32.mrb[0].mxu0
        %v1398 = vadd.f32 %v1225, %v1397
        %v1399 = vpop.f32.mrb[0].mxu0
        %v1400 = vpop.f32.mrb[0].mxu0
        %v1401 = vadd.f32 %v1225, %v1400
        %v1402 = vpop.f32.mrb[0].mxu0
        %1403 = vmatprep.mubr.bf16.mxu0 0
        %1404 = vmatmul.mubr.bf16.gmra.mrb[0].mxu0 %v1017
        %v1405 = vpop.f32.mrb[0].mxu0
        %v1406 = vadd.f32 %v1225, %v1405
        %v1407 = vpop.f32.mrb[0].mxu0
        %v1408 = vpop.f32.mrb[0].mxu0
        %v1409 = vadd.f32 %v1225, %v1408
        %v1410 = vpop.f32.mrb[0].mxu0
        %1411 = vdwg.mxu0
        %v1412 = vpack.c.bf16 %v1289, %v1286
        %v1413 = vpack.c.bf16 %v1297, %v1294
        %v1414 = vpack.c.bf16 %v1305, %v1302
        %v1415 = vpack.c.bf16 %v1313, %v1310
        %v1416 = vpack.c.bf16 %v1321, %v1318
        %v1417 = vpack.c.bf16 %v1329, %v1326
        %v1418 = vpack.c.bf16 %v1337, %v1334
        %v1419 = vpack.c.bf16 %v1345, %v1342
        %v1420 = vpack.c.bf16 %v1353, %v1350
        %v1421 = vpack.c.bf16 %v1361, %v1358
        %v1422 = vpack.c.bf16 %v1369, %v1366
        %v1423 = vpack.c.bf16 %v1377, %v1374
        %v1424 = vpack.c.bf16 %v1385, %v1382
        %v1425 = vpack.c.bf16 %v1393, %v1390
        %v1426 = vpack.c.bf16 %v1401, %v1398
        %v1427 = vpack.c.bf16 %v1409, %v1406
        %1428 = vst.msk [vmem:[#allocation3] sm:$0xff] %vm484, %v1412
        %1429 = vst.msk [vmem:[#allocation3 + $0x8] sm:$0xff] %vm484, %v1413
        %1430 = vst.msk [vmem:[#allocation3 + $0x10] sm:$0xff] %vm484, %v1414
        %1431 = vst.msk [vmem:[#allocation3 + $0x18] sm:$0xff] %vm484, %v1415
        %1432 = vst.msk [vmem:[#allocation3 + $0x20] sm:$0xff] %vm484, %v1416
        %1433 = vst.msk [vmem:[#allocation3 + $0x28] sm:$0xff] %vm484, %v1417
        %1434 = vst.msk [vmem:[#allocation3 + $0x30] sm:$0xff] %vm484, %v1418
        %1435 = vst.msk [vmem:[#allocation3 + $0x38] sm:$0xff] %vm484, %v1419
        %1436 = vst.msk [vmem:[#allocation3 + $0x40] sm:$0xff] %vm484, %v1420
        %1437 = vst.msk [vmem:[#allocation3 + $0x48] sm:$0xff] %vm484, %v1421
        %1438 = vst.msk [vmem:[#allocation3 + $0x50] sm:$0xff] %vm484, %v1422
        %1439 = vst.msk [vmem:[#allocation3 + $0x58] sm:$0xff] %vm484, %v1423
        %1440 = vst.msk [vmem:[#allocation3 + $0x60] sm:$0xff] %vm484, %v1424
        %1441 = vst.msk [vmem:[#allocation3 + $0x68] sm:$0xff] %vm484, %v1425
        %1442 = vst.msk [vmem:[#allocation3 + $0x70] sm:$0xff] %vm484, %v1426
        %1443 = vst.msk [vmem:[#allocation3 + $0x78] sm:$0xff] %vm484, %v1427
      $region72: #{tpu_custom_call.1} parent=67 // pred_fallthru
        _
      %s1444 = smul.u32 %s28, 128
      %s1445 = scalar_lea.vmem %s426, %s1444
      %v1446 = vld [vmem:[%s1445] sm:$0xff]
      %v1447 = vld [vmem:[%s1445 + $0x8] sm:$0xff]
      %v1448 = vld [vmem:[%s1445 + $0x10] sm:$0xff]
      %v1449 = vld [vmem:[%s1445 + $0x18] sm:$0xff]
      %v1450 = vld [vmem:[%s1445 + $0x20] sm:$0xff]
      %v1451 = vld [vmem:[%s1445 + $0x28] sm:$0xff]
      %v1452 = vld [vmem:[%s1445 + $0x30] sm:$0xff]
      %v1453 = vld [vmem:[%s1445 + $0x38] sm:$0xff]
      %v1454 = vld [vmem:[%s1445 + $0x40] sm:$0xff]
      %v1455 = vld [vmem:[%s1445 + $0x48] sm:$0xff]
      %v1456 = vld [vmem:[%s1445 + $0x50] sm:$0xff]
      %v1457 = vld [vmem:[%s1445 + $0x58] sm:$0xff]
      %v1458 = vld [vmem:[%s1445 + $0x60] sm:$0xff]
      %v1459 = vld [vmem:[%s1445 + $0x68] sm:$0xff]
      %v1460 = vld [vmem:[%s1445 + $0x70] sm:$0xff]
      %v1461 = vld [vmem:[%s1445 + $0x78] sm:$0xff]
      %v1462 = vld [vmem:[#allocation4] sm:$0x1]
      %v1464 = vlaneseq
      %v1465 = vshrl.u32 %v1464, 7
      %v1466 = vsub.s32 0, %v1465
      %v1467 = vrot.slane %v1462, %v1466
      %v1469 = vsub.f32 %v1446, %v1467
      %v1470 = vsub.f32 %v1447, %v1467
      %v1471 = vsub.f32 %v1448, %v1467
      %v1472 = vsub.f32 %v1449, %v1467
      %v1473 = vsub.f32 %v1450, %v1467
      %v1474 = vsub.f32 %v1451, %v1467
      %v1475 = vsub.f32 %v1452, %v1467
      %v1476 = vsub.f32 %v1453, %v1467
      %v1477 = vsub.f32 %v1454, %v1467
      %v1478 = vsub.f32 %v1455, %v1467
      %v1479 = vsub.f32 %v1456, %v1467
      %v1480 = vsub.f32 %v1457, %v1467
      %v1481 = vsub.f32 %v1458, %v1467
      %v1482 = vsub.f32 %v1459, %v1467
      %v1483 = vsub.f32 %v1460, %v1467
      %v1484 = vsub.f32 %v1461, %v1467
      %v1485 = vld [vmem:[#allocation5] sm:$0x1]
      %v1486 = vld [vmem:[%s1] sm:$0x1]
      %v1487 = vmul.f32 %v1485, %v1486
      %v1489 = vlaneseq
      %v1490 = vshrl.u32 %v1489, 7
      %v1491 = vsub.s32 0, %v1490
      %v1492 = vrot.slane %v1487, %v1491
      %v1494 = vmul.f32 %v1469, %v1492
      %v1495 = vmul.f32 %v1470, %v1492
      %v1496 = vmul.f32 %v1471, %v1492
      %v1497 = vmul.f32 %v1472, %v1492
      %v1498 = vmul.f32 %v1473, %v1492
      %v1499 = vmul.f32 %v1474, %v1492
      %v1500 = vmul.f32 %v1475, %v1492
      %v1501 = vmul.f32 %v1476, %v1492
      %v1502 = vmul.f32 %v1477, %v1492
      %v1503 = vmul.f32 %v1478, %v1492
      %v1504 = vmul.f32 %v1479, %v1492
      %v1505 = vmul.f32 %v1480, %v1492
      %v1506 = vmul.f32 %v1481, %v1492
      %v1507 = vmul.f32 %v1482, %v1492
      %v1508 = vmul.f32 %v1483, %v1492
      %v1509 = vmul.f32 %v1484, %v1492
      %v1510 = vld [vmem:[%s2] sm:$0x1]
      %v1512 = vlaneseq
      %v1513 = vshrl.u32 %v1512, 7
      %v1514 = vsub.s32 0, %v1513
      %v1515 = vrot.slane %v1510, %v1514
      %v1517 = vadd.f32 %v1494, %v1515
      %v1518 = vadd.f32 %v1495, %v1515
      %v1519 = vadd.f32 %v1496, %v1515
      %v1520 = vadd.f32 %v1497, %v1515
      %v1521 = vadd.f32 %v1498, %v1515
      %v1522 = vadd.f32 %v1499, %v1515
      %v1523 = vadd.f32 %v1500, %v1515
      %v1524 = vadd.f32 %v1501, %v1515
      %v1525 = vadd.f32 %v1502, %v1515
      %v1526 = vadd.f32 %v1503, %v1515
      %v1527 = vadd.f32 %v1504, %v1515
      %v1528 = vadd.f32 %v1505, %v1515
      %v1529 = vadd.f32 %v1506, %v1515
      %v1530 = vadd.f32 %v1507, %v1515
      %v1531 = vadd.f32 %v1508, %v1515
      %v1532 = vadd.f32 %v1509, %v1515
      %v1533 = vpack.c.bf16 %v1518, %v1517
      %v1534 = vpack.c.bf16 %v1520, %v1519
      %v1535 = vpack.c.bf16 %v1522, %v1521
      %v1536 = vpack.c.bf16 %v1524, %v1523
      %v1537 = vpack.c.bf16 %v1526, %v1525
      %v1538 = vpack.c.bf16 %v1528, %v1527
      %v1539 = vpack.c.bf16 %v1530, %v1529
      %v1540 = vpack.c.bf16 %v1532, %v1531
      %v1541 = vld [vmem:[%s4] sm:$0xf]
      %v1542 = vld [vmem:[%s4 + $0x4] sm:$0xf]
      %v1543 = vld [vmem:[%s4 + $0x8] sm:$0xf]
      %v1544 = vld [vmem:[%s4 + $0xc] sm:$0xf]
      %v1545 = vld [vmem:[%s4 + $0x10] sm:$0xf]
      %v1546 = vld [vmem:[%s4 + $0x14] sm:$0xf]
      %v1547 = vld [vmem:[%s4 + $0x18] sm:$0xf]
      %v1548 = vld [vmem:[%s4 + $0x1c] sm:$0xf]
      %v1549 = vld [vmem:[%s5] sm:$0x1]
      %v1551 = vlaneseq
      %v1552 = vshrl.u32 %v1551, 7
      %v1553 = vsub.s32 0, %v1552
      %v1554 = vrot.slane %v1549, %v1553
      %v1564 = vunpack.c.l.b16 %v1541
      %v1565 = vunpack.c.l.b16 %v1542
      %v1566 = vunpack.c.l.b16 %v1543
      %v1567 = vunpack.c.l.b16 %v1544
      %v1568 = vunpack.c.l.b16 %v1545
      %v1569 = vunpack.c.l.b16 %v1546
      %v1570 = vunpack.c.l.b16 %v1547
      %v1571 = vunpack.c.l.b16 %v1548
      %v1572 = vpack.c.b16 %v1565, %v1564
      %v1573 = vpack.c.b16 %v1567, %v1566
      %v1574 = vpack.c.b16 %v1569, %v1568
      %v1575 = vpack.c.b16 %v1571, %v1570
      %vm1580 = vcmask 523264
      %v1582 = vsel %vm1580, %v1533, 0
      %v1585 = vsel %vm1580, %v1534, 0
      %v1588 = vsel %vm1580, %v1535, 0
      %v1591 = vsel %vm1580, %v1536, 0
      %v1594 = vsel %vm1580, %v1537, 0
      %v1597 = vsel %vm1580, %v1538, 0
      %v1600 = vsel %vm1580, %v1539, 0
      %v1603 = vsel %vm1580, %v1540, 0
      %1605 = vmatprep.subr.bf16.mxu0 0
      %1606 = vmatpush1.bf16.msra.mxu0 %v1572
      %1607 = vmatprep.subr.bf16.mxu0 0
      %1608 = vmatpush1.bf16.msra.mxu0 %v1573
      %1609 = vmatprep.subr.bf16.mxu0 0
      %1610 = vmatpush1.bf16.msra.mxu0 %v1574
      %1611 = vmatprep.subr.bf16.mxu0 0
      %1612 = vmatpush1.bf16.msra.mxu0 %v1575
      %1613 = vmatprep.subr.bf16.mxu0 0
      %1614 = vmatpush1.bf16.msra.mxu0 0
      %1615 = vmatprep.subr.bf16.mxu0 0
      %1616 = vmatpush1.bf16.msra.mxu0 0
      %1617 = vmatprep.subr.bf16.mxu0 0
      %1618 = vmatpush1.bf16.msra.mxu0 0
      %1619 = vmatprep.subr.bf16.mxu0 0
      %1620 = vmatpush1.bf16.msra.mxu0 0
      %1621 = vmatprep.subr.bf16.mxu0 0
      %1622 = vmatpush1.bf16.msra.mxu0 0
      %1623 = vmatprep.subr.bf16.mxu0 0
      %1624 = vmatpush1.bf16.msra.mxu0 0
      %1625 = vmatprep.subr.bf16.mxu0 0
      %1626 = vmatpush1.bf16.msra.mxu0 0
      %1627 = vmatprep.subr.bf16.mxu0 0
      %1628 = vmatpush1.bf16.msra.mxu0 0
      %1629 = vmatprep.subr.bf16.mxu0 0
      %1630 = vmatpush1.bf16.msra.mxu0 0
      %1631 = vmatprep.subr.bf16.mxu0 0
      %1632 = vmatpush1.bf16.msra.mxu0 0
      %1633 = vmatprep.subr.bf16.mxu0 0
      %1634 = vmatpush1.bf16.msra.mxu0 0
      %1635 = vmatprep.subr.bf16.mxu0 0
      %1636 = vmatpush1.bf16.msra.mxu0 0
      %1637 = vmatprep.mubr.bf16.mxu0 0
      %1638 = vmatmul.mubr.bf16.gmra.mrb[0].mxu0 %v1582
      %v1639 = vpop.f32.mrb[0].mxu0
      %v1640 = vadd.f32 %v1554, %v1639
      %v1641 = vpop.f32.mrb[0].mxu0
      %v1642 = vpop.f32.mrb[0].mxu0
      %v1643 = vadd.f32 %v1554, %v1642
      %v1644 = vpop.f32.mrb[0].mxu0
      %1645 = vmatprep.mubr.bf16.mxu0 0
      %1646 = vmatmul.mubr.bf16.gmra.mrb[0].mxu0 %v1585
      %v1647 = vpop.f32.mrb[0].mxu0
      %v1648 = vadd.f32 %v1554, %v1647
      %v1649 = vpop.f32.mrb[0].mxu0
      %v1650 = vpop.f32.mrb[0].mxu0
      %v1651 = vadd.f32 %v1554, %v1650
      %v1652 = vpop.f32.mrb[0].mxu0
      %1653 = vmatprep.mubr.bf16.mxu0 0
      %1654 = vmatmul.mubr.bf16.gmra.mrb[0].mxu0 %v1588
      %v1655 = vpop.f32.mrb[0].mxu0
      %v1656 = vadd.f32 %v1554, %v1655
      %v1657 = vpop.f32.mrb[0].mxu0
      %v1658 = vpop.f32.mrb[0].mxu0
      %v1659 = vadd.f32 %v1554, %v1658
      %v1660 = vpop.f32.mrb[0].mxu0
      %1661 = vmatprep.mubr.bf16.mxu0 0
      %1662 = vmatmul.mubr.bf16.gmra.mrb[0].mxu0 %v1591
      %v1663 = vpop.f32.mrb[0].mxu0
      %v1664 = vadd.f32 %v1554, %v1663
      %v1665 = vpop.f32.mrb[0].mxu0
      %v1666 = vpop.f32.mrb[0].mxu0
      %v1667 = vadd.f32 %v1554, %v1666
      %v1668 = vpop.f32.mrb[0].mxu0
      %1669 = vmatprep.mubr.bf16.mxu0 0
      %1670 = vmatmul.mubr.bf16.gmra.mrb[0].mxu0 %v1594
      %v1671 = vpop.f32.mrb[0].mxu0
      %v1672 = vadd.f32 %v1554, %v1671
      %v1673 = vpop.f32.mrb[0].mxu0
      %v1674 = vpop.f32.mrb[0].mxu0
      %v1675 = vadd.f32 %v1554, %v1674
      %v1676 = vpop.f32.mrb[0].mxu0
      %1677 = vmatprep.mubr.bf16.mxu0 0
      %1678 = vmatmul.mubr.bf16.gmra.mrb[0].mxu0 %v1597
      %v1679 = vpop.f32.mrb[0].mxu0
      %v1680 = vadd.f32 %v1554, %v1679
      %v1681 = vpop.f32.mrb[0].mxu0
      %v1682 = vpop.f32.mrb[0].mxu0
      %v1683 = vadd.f32 %v1554, %v1682
      %v1684 = vpop.f32.mrb[0].mxu0
      %1685 = vmatprep.mubr.bf16.mxu0 0
      %1686 = vmatmul.mubr.bf16.gmra.mrb[0].mxu0 %v1600
      %v1687 = vpop.f32.mrb[0].mxu0
      %v1688 = vadd.f32 %v1554, %v1687
      %v1689 = vpop.f32.mrb[0].mxu0
      %v1690 = vpop.f32.mrb[0].mxu0
      %v1691 = vadd.f32 %v1554, %v1690
      %v1692 = vpop.f32.mrb[0].mxu0
      %1693 = vmatprep.mubr.bf16.mxu0 0
      %1694 = vmatmul.mubr.bf16.gmra.mrb[0].mxu0 %v1603
      %v1695 = vpop.f32.mrb[0].mxu0
      %v1696 = vadd.f32 %v1554, %v1695
      %v1697 = vpop.f32.mrb[0].mxu0
      %v1698 = vpop.f32.mrb[0].mxu0
      %v1699 = vadd.f32 %v1554, %v1698
      %v1700 = vpop.f32.mrb[0].mxu0
      %1701 = vdwg.mxu0
      %v1702 = vpack.c.bf16 %v1643, %v1640
      %v1703 = vpack.c.bf16 %v1651, %v1648
      %v1704 = vpack.c.bf16 %v1659, %v1656
      %v1705 = vpack.c.bf16 %v1667, %v1664
      %v1706 = vpack.c.bf16 %v1675, %v1672
      %v1707 = vpack.c.bf16 %v1683, %v1680
      %v1708 = vpack.c.bf16 %v1691, %v1688
      %v1709 = vpack.c.bf16 %v1699, %v1696
      %v1710 = vld [vmem:[#allocation2] sm:$0xff]
      %v1711 = vld [vmem:[#allocation2 + $0x8] sm:$0xff]
      %v1712 = vld [vmem:[#allocation2 + $0x10] sm:$0xff]
      %v1713 = vld [vmem:[#allocation2 + $0x18] sm:$0xff]
      %v1714 = vld [vmem:[#allocation2 + $0x20] sm:$0xff]
      %v1715 = vld [vmem:[#allocation2 + $0x28] sm:$0xff]
      %v1716 = vld [vmem:[#allocation2 + $0x30] sm:$0xff]
      %v1717 = vld [vmem:[#allocation2 + $0x38] sm:$0xff]
      %v1718 = vld [vmem:[#allocation2 + $0x40] sm:$0xff]
      %v1719 = vld [vmem:[#allocation2 + $0x48] sm:$0xff]
      %v1720 = vld [vmem:[#allocation2 + $0x50] sm:$0xff]
      %v1721 = vld [vmem:[#allocation2 + $0x58] sm:$0xff]
      %v1722 = vld [vmem:[#allocation2 + $0x60] sm:$0xff]
      %v1723 = vld [vmem:[#allocation2 + $0x68] sm:$0xff]
      %v1724 = vld [vmem:[#allocation2 + $0x70] sm:$0xff]
      %v1725 = vld [vmem:[#allocation2 + $0x78] sm:$0xff]
      %v1727 = vsel %vm1580, %v1702, 0
      %v1730 = vsel %vm1580, %v1703, 0
      %v1733 = vsel %vm1580, %v1704, 0
      %v1736 = vsel %vm1580, %v1705, 0
      %v1739 = vsel %vm1580, %v1706, 0
      %v1742 = vsel %vm1580, %v1707, 0
      %v1745 = vsel %vm1580, %v1708, 0
      %v1748 = vsel %vm1580, %v1709, 0
      %v1751 = vsel %vm1580, %v1710, 0
      %v1754 = vsel %vm1580, %v1711, 0
      %v1757 = vsel %vm1580, %v1712, 0
      %v1760 = vsel %vm1580, %v1713, 0
      %v1763 = vsel %vm1580, %v1714, 0
      %v1766 = vsel %vm1580, %v1715, 0
      %v1769 = vsel %vm1580, %v1716, 0
      %v1772 = vsel %vm1580, %v1717, 0
      %v1775 = vsel %vm1580, %v1718, 0
      %v1778 = vsel %vm1580, %v1719, 0
      %v1781 = vsel %vm1580, %v1720, 0
      %v1784 = vsel %vm1580, %v1721, 0
      %v1787 = vsel %vm1580, %v1722, 0
      %v1790 = vsel %vm1580, %v1723, 0
      %v1793 = vsel %vm1580, %v1724, 0
      %v1796 = vsel %vm1580, %v1725, 0
      %1798 = vmatprep.subr.bf16.mxu0 0
      %1799 = vmatpush1.bf16.xpose.msra.mxu0 %v1751
      %1800 = vmatprep.subr.bf16.mxu0 0
      %1801 = vmatpush1.bf16.xpose.msra.mxu0 %v1754
      %1802 = vmatprep.subr.bf16.mxu0 0
      %1803 = vmatpush1.bf16.xpose.msra.mxu0 %v1757
      %1804 = vmatprep.subr.bf16.mxu0 0
      %1805 = vmatpush1.bf16.xpose.msra.mxu0 %v1760
      %1806 = vmatprep.subr.bf16.mxu0 0
      %1807 = vmatpush1.bf16.xpose.msra.mxu0 %v1763
      %1808 = vmatprep.subr.bf16.mxu0 0
      %1809 = vmatpush1.bf16.xpose.msra.mxu0 %v1766
      %1810 = vmatprep.subr.bf16.mxu0 0
      %1811 = vmatpush1.bf16.xpose.msra.mxu0 %v1769
      %1812 = vmatprep.subr.bf16.mxu0 0
      %1813 = vmatpush1.bf16.xpose.msra.mxu0 %v1772
      %1814 = vmatprep.subr.bf16.mxu0 0
      %1815 = vmatpush1.bf16.xpose.msra.mxu0 %v1775
      %1816 = vmatprep.subr.bf16.mxu0 0
      %1817 = vmatpush1.bf16.xpose.msra.mxu0 %v1778
      %1818 = vmatprep.subr.bf16.mxu0 0
      %1819 = vmatpush1.bf16.xpose.msra.mxu0 %v1781
      %1820 = vmatprep.subr.bf16.mxu0 0
      %1821 = vmatpush1.bf16.xpose.msra.mxu0 %v1784
      %1822 = vmatprep.subr.bf16.mxu0 0
      %1823 = vmatpush1.bf16.xpose.msra.mxu0 %v1787
      %1824 = vmatprep.subr.bf16.mxu0 0
      %1825 = vmatpush1.bf16.xpose.msra.mxu0 %v1790
      %1826 = vmatprep.subr.bf16.mxu0 0
      %1827 = vmatpush1.bf16.xpose.msra.mxu0 %v1793
      %1828 = vmatprep.subr.bf16.mxu0 0
      %1829 = vmatpush1.bf16.xpose.msra.mxu0 %v1796
      %1830 = vmatprep.mubr.bf16.mxu0 0
      %1831 = vmatmul.mubr.bf16.gmra.mrb[0].mxu0 %v1727
      %v1832 = vpop.f32.mrb[0].mxu0
      %v1833 = vadd.f32 0.0, %v1832
      %v1834 = vpop.f32.mrb[0].mxu0
      %v1835 = vadd.f32 0.0, %v1834
      %v1836 = vpop.f32.mrb[0].mxu0
      %v1837 = vadd.f32 0.0, %v1836
      %v1838 = vpop.f32.mrb[0].mxu0
      %v1839 = vadd.f32 0.0, %v1838
      %1840 = vmatprep.mubr.bf16.mxu0 0
      %1841 = vmatmul.mubr.bf16.gmra.mrb[0].mxu0 %v1730
      %v1842 = vpop.f32.mrb[0].mxu0
      %v1843 = vadd.f32 0.0, %v1842
      %v1844 = vpop.f32.mrb[0].mxu0
      %v1845 = vadd.f32 0.0, %v1844
      %v1846 = vpop.f32.mrb[0].mxu0
      %v1847 = vadd.f32 0.0, %v1846
      %v1848 = vpop.f32.mrb[0].mxu0
      %v1849 = vadd.f32 0.0, %v1848
      %1850 = vmatprep.mubr.bf16.mxu0 0
      %1851 = vmatmul.mubr.bf16.gmra.mrb[0].mxu0 %v1733
      %v1852 = vpop.f32.mrb[0].mxu0
      %v1853 = vadd.f32 0.0, %v1852
      %v1854 = vpop.f32.mrb[0].mxu0
      %v1855 = vadd.f32 0.0, %v1854
      %v1856 = vpop.f32.mrb[0].mxu0
      %v1857 = vadd.f32 0.0, %v1856
      %v1858 = vpop.f32.mrb[0].mxu0
      %v1859 = vadd.f32 0.0, %v1858
      %1860 = vmatprep.mubr.bf16.mxu0 0
      %1861 = vmatmul.mubr.bf16.gmra.mrb[0].mxu0 %v1736
      %v1862 = vpop.f32.mrb[0].mxu0
      %v1863 = vadd.f32 0.0, %v1862
      %v1864 = vpop.f32.mrb[0].mxu0
      %v1865 = vadd.f32 0.0, %v1864
      %v1866 = vpop.f32.mrb[0].mxu0
      %v1867 = vadd.f32 0.0, %v1866
      %v1868 = vpop.f32.mrb[0].mxu0
      %v1869 = vadd.f32 0.0, %v1868
      %1870 = vmatprep.mubr.bf16.mxu0 0
      %1871 = vmatmul.mubr.bf16.gmra.mrb[0].mxu0 %v1739
      %v1872 = vpop.f32.mrb[0].mxu0
      %v1873 = vadd.f32 0.0, %v1872
      %v1874 = vpop.f32.mrb[0].mxu0
      %v1875 = vadd.f32 0.0, %v1874
      %v1876 = vpop.f32.mrb[0].mxu0
      %v1877 = vadd.f32 0.0, %v1876
      %v1878 = vpop.f32.mrb[0].mxu0
      %v1879 = vadd.f32 0.0, %v1878
      %1880 = vmatprep.mubr.bf16.mxu0 0
      %1881 = vmatmul.mubr.bf16.gmra.mrb[0].mxu0 %v1742
      %v1882 = vpop.f32.mrb[0].mxu0
      %v1883 = vadd.f32 0.0, %v1882
      %v1884 = vpop.f32.mrb[0].mxu0
      %v1885 = vadd.f32 0.0, %v1884
      %v1886 = vpop.f32.mrb[0].mxu0
      %v1887 = vadd.f32 0.0, %v1886
      %v1888 = vpop.f32.mrb[0].mxu0
      %v1889 = vadd.f32 0.0, %v1888
      %1890 = vmatprep.mubr.bf16.mxu0 0
      %1891 = vmatmul.mubr.bf16.gmra.mrb[0].mxu0 %v1745
      %v1892 = vpop.f32.mrb[0].mxu0
      %v1893 = vadd.f32 0.0, %v1892
      %v1894 = vpop.f32.mrb[0].mxu0
      %v1895 = vadd.f32 0.0, %v1894
      %v1896 = vpop.f32.mrb[0].mxu0
      %v1897 = vadd.f32 0.0, %v1896
      %v1898 = vpop.f32.mrb[0].mxu0
      %v1899 = vadd.f32 0.0, %v1898
      %1900 = vmatprep.mubr.bf16.mxu0 0
      %1901 = vmatmul.mubr.bf16.gmra.mrb[0].mxu0 %v1748
      %v1902 = vpop.f32.mrb[0].mxu0
      %v1903 = vadd.f32 0.0, %v1902
      %v1904 = vpop.f32.mrb[0].mxu0
      %v1905 = vadd.f32 0.0, %v1904
      %v1906 = vpop.f32.mrb[0].mxu0
      %v1907 = vadd.f32 0.0, %v1906
      %v1908 = vpop.f32.mrb[0].mxu0
      %v1909 = vadd.f32 0.0, %v1908
      %1910 = vdwg.mxu0
      %v1911 = vmax.f32 %v1833, %v1835
      %1912 = vmax.xlane.f32.xlu0 %v1911
      %v1913 = vpop.xlane.xlu0 %1912
      %v1914 = vmax.f32 %v1837, %v1839
      %1915 = vmax.xlane.f32.xlu0 %v1914
      %v1916 = vpop.xlane.xlu0 %1915
      %v1917 = vmax.f32 %v1843, %v1845
      %1918 = vmax.xlane.f32.xlu0 %v1917
      %v1919 = vpop.xlane.xlu0 %1918
      %v1920 = vmax.f32 %v1847, %v1849
      %1921 = vmax.xlane.f32.xlu0 %v1920
      %v1922 = vpop.xlane.xlu0 %1921
      %v1923 = vmax.f32 %v1853, %v1855
      %1924 = vmax.xlane.f32.xlu0 %v1923
      %v1925 = vpop.xlane.xlu0 %1924
      %v1926 = vmax.f32 %v1857, %v1859
      %1927 = vmax.xlane.f32.xlu0 %v1926
      %v1928 = vpop.xlane.xlu0 %1927
      %v1929 = vmax.f32 %v1863, %v1865
      %1930 = vmax.xlane.f32.xlu0 %v1929
      %v1931 = vpop.xlane.xlu0 %1930
      %v1932 = vmax.f32 %v1867, %v1869
      %1933 = vmax.xlane.f32.xlu0 %v1932
      %v1934 = vpop.xlane.xlu0 %1933
      %v1935 = vmax.f32 %v1873, %v1875
      %1936 = vmax.xlane.f32.xlu0 %v1935
      %v1937 = vpop.xlane.xlu0 %1936
      %v1938 = vmax.f32 %v1877, %v1879
      %1939 = vmax.xlane.f32.xlu0 %v1938
      %v1940 = vpop.xlane.xlu0 %1939
      %v1941 = vmax.f32 %v1883, %v1885
      %1942 = vmax.xlane.f32.xlu0 %v1941
      %v1943 = vpop.xlane.xlu0 %1942
      %v1944 = vmax.f32 %v1887, %v1889
      %1945 = vmax.xlane.f32.xlu0 %v1944
      %v1946 = vpop.xlane.xlu0 %1945
      %v1947 = vmax.f32 %v1893, %v1895
      %1948 = vmax.xlane.f32.xlu0 %v1947
      %v1949 = vpop.xlane.xlu0 %1948
      %v1950 = vmax.f32 %v1897, %v1899
      %1951 = vmax.xlane.f32.xlu0 %v1950
      %v1952 = vpop.xlane.xlu0 %1951
      %v1953 = vmax.f32 %v1903, %v1905
      %1954 = vmax.xlane.f32.xlu0 %v1953
      %v1955 = vpop.xlane.xlu0 %1954
      %v1956 = vmax.f32 %v1907, %v1909
      %1957 = vmax.xlane.f32.xlu0 %v1956
      %v1958 = vpop.xlane.xlu0 %1957
      %v1959 = vsub.f32 %v1833, %v1913
      %v1960 = vsub.f32 %v1835, %v1913
      %v1961 = vsub.f32 %v1837, %v1916
      %v1962 = vsub.f32 %v1839, %v1916
      %v1963 = vsub.f32 %v1843, %v1919
      %v1964 = vsub.f32 %v1845, %v1919
      %v1965 = vsub.f32 %v1847, %v1922
      %v1966 = vsub.f32 %v1849, %v1922
      %v1967 = vsub.f32 %v1853, %v1925
      %v1968 = vsub.f32 %v1855, %v1925
      %v1969 = vsub.f32 %v1857, %v1928
      %v1970 = vsub.f32 %v1859, %v1928
      %v1971 = vsub.f32 %v1863, %v1931
      %v1972 = vsub.f32 %v1865, %v1931
      %v1973 = vsub.f32 %v1867, %v1934
      %v1974 = vsub.f32 %v1869, %v1934
      %v1975 = vsub.f32 %v1873, %v1937
      %v1976 = vsub.f32 %v1875, %v1937
      %v1977 = vsub.f32 %v1877, %v1940
      %v1978 = vsub.f32 %v1879, %v1940
      %v1979 = vsub.f32 %v1883, %v1943
      %v1980 = vsub.f32 %v1885, %v1943
      %v1981 = vsub.f32 %v1887, %v1946
      %v1982 = vsub.f32 %v1889, %v1946
      %v1983 = vsub.f32 %v1893, %v1949
      %v1984 = vsub.f32 %v1895, %v1949
      %v1985 = vsub.f32 %v1897, %v1952
      %v1986 = vsub.f32 %v1899, %v1952
      %v1987 = vsub.f32 %v1903, %v1955
      %v1988 = vsub.f32 %v1905, %v1955
      %v1989 = vsub.f32 %v1907, %v1958
      %v1990 = vsub.f32 %v1909, %v1958
      %v1991 = vmul.f32 %v1959, 1.442695
      %v1992 = vpow.pop %v1991
      %v1993 = vmul.f32 %v1960, 1.442695
      %v1994 = vpow.pop %v1993
      %v1995 = vmul.f32 %v1961, 1.442695
      %v1996 = vpow.pop %v1995
      %v1997 = vmul.f32 %v1962, 1.442695
      %v1998 = vpow.pop %v1997
      %v1999 = vmul.f32 %v1963, 1.442695
      %v2000 = vpow.pop %v1999
      %v2001 = vmul.f32 %v1964, 1.442695
      %v2002 = vpow.pop %v2001
      %v2003 = vmul.f32 %v1965, 1.442695
      %v2004 = vpow.pop %v2003
      %v2005 = vmul.f32 %v1966, 1.442695
      %v2006 = vpow.pop %v2005
      %v2007 = vmul.f32 %v1967, 1.442695
      %v2008 = vpow.pop %v2007
      %v2009 = vmul.f32 %v1968, 1.442695
      %v2010 = vpow.pop %v2009
      %v2011 = vmul.f32 %v1969, 1.442695
      %v2012 = vpow.pop %v2011
      %v2013 = vmul.f32 %v1970, 1.442695
      %v2014 = vpow.pop %v2013
      %v2015 = vmul.f32 %v1971, 1.442695
      %v2016 = vpow.pop %v2015
      %v2017 = vmul.f32 %v1972, 1.442695
      %v2018 = vpow.pop %v2017
      %v2019 = vmul.f32 %v1973, 1.442695
      %v2020 = vpow.pop %v2019
      %v2021 = vmul.f32 %v1974, 1.442695
      %v2022 = vpow.pop %v2021
      %v2023 = vmul.f32 %v1975, 1.442695
      %v2024 = vpow.pop %v2023
      %v2025 = vmul.f32 %v1976, 1.442695
      %v2026 = vpow.pop %v2025
      %v2027 = vmul.f32 %v1977, 1.442695
      %v2028 = vpow.pop %v2027
      %v2029 = vmul.f32 %v1978, 1.442695
      %v2030 = vpow.pop %v2029
      %v2031 = vmul.f32 %v1979, 1.442695
      %v2032 = vpow.pop %v2031
      %v2033 = vmul.f32 %v1980, 1.442695
      %v2034 = vpow.pop %v2033
      %v2035 = vmul.f32 %v1981, 1.442695
      %v2036 = vpow.pop %v2035
      %v2037 = vmul.f32 %v1982, 1.442695
      %v2038 = vpow.pop %v2037
      %v2039 = vmul.f32 %v1983, 1.442695
      %v2040 = vpow.pop %v2039
      %v2041 = vmul.f32 %v1984, 1.442695
      %v2042 = vpow.pop %v2041
      %v2043 = vmul.f32 %v1985, 1.442695
      %v2044 = vpow.pop %v2043
      %v2045 = vmul.f32 %v1986, 1.442695
      %v2046 = vpow.pop %v2045
      %v2047 = vmul.f32 %v1987, 1.442695
      %v2048 = vpow.pop %v2047
      %v2049 = vmul.f32 %v1988, 1.442695
      %v2050 = vpow.pop %v2049
      %v2051 = vmul.f32 %v1989, 1.442695
      %v2052 = vpow.pop %v2051
      %v2053 = vmul.f32 %v1990, 1.442695
      %v2054 = vpow.pop %v2053
      %v2055 = vadd.f32 %v1992, %v1994
      %2056 = vadd.xlane.f32.xlu0 %v2055
      %v2057 = vpop.xlane.xlu0 %2056
      %v2058 = vadd.f32 %v1996, %v1998
      %2059 = vadd.xlane.f32.xlu0 %v2058
      %v2060 = vpop.xlane.xlu0 %2059
      %v2061 = vadd.f32 %v2000, %v2002
      %2062 = vadd.xlane.f32.xlu0 %v2061
      %v2063 = vpop.xlane.xlu0 %2062
      %v2064 = vadd.f32 %v2004, %v2006
      %2065 = vadd.xlane.f32.xlu0 %v2064
      %v2066 = vpop.xlane.xlu0 %2065
      %v2067 = vadd.f32 %v2008, %v2010
      %2068 = vadd.xlane.f32.xlu0 %v2067
      %v2069 = vpop.xlane.xlu0 %2068
      %v2070 = vadd.f32 %v2012, %v2014
      %2071 = vadd.xlane.f32.xlu0 %v2070
      %v2072 = vpop.xlane.xlu0 %2071
      %v2073 = vadd.f32 %v2016, %v2018
      %2074 = vadd.xlane.f32.xlu0 %v2073
      %v2075 = vpop.xlane.xlu0 %2074
      %v2076 = vadd.f32 %v2020, %v2022
      %2077 = vadd.xlane.f32.xlu0 %v2076
      %v2078 = vpop.xlane.xlu0 %2077
      %v2079 = vadd.f32 %v2024, %v2026
      %2080 = vadd.xlane.f32.xlu0 %v2079
      %v2081 = vpop.xlane.xlu0 %2080
      %v2082 = vadd.f32 %v2028, %v2030
      %2083 = vadd.xlane.f32.xlu0 %v2082
      %v2084 = vpop.xlane.xlu0 %2083
      %v2085 = vadd.f32 %v2032, %v2034
      %2086 = vadd.xlane.f32.xlu0 %v2085
      %v2087 = vpop.xlane.xlu0 %2086
      %v2088 = vadd.f32 %v2036, %v2038
      %2089 = vadd.xlane.f32.xlu0 %v2088
      %v2090 = vpop.xlane.xlu0 %2089
      %v2091 = vadd.f32 %v2040, %v2042
      %2092 = vadd.xlane.f32.xlu0 %v2091
      %v2093 = vpop.xlane.xlu0 %2092
      %v2094 = vadd.f32 %v2044, %v2046
      %2095 = vadd.xlane.f32.xlu0 %v2094
      %v2096 = vpop.xlane.xlu0 %2095
      %v2097 = vadd.f32 %v2048, %v2050
      %2098 = vadd.xlane.f32.xlu0 %v2097
      %v2099 = vpop.xlane.xlu0 %2098
      %v2100 = vadd.f32 %v2052, %v2054
      %2101 = vadd.xlane.f32.xlu0 %v2100
      %v2102 = vpop.xlane.xlu0 %2101
      %v2103 = vpack.c.bf16 %v1996, %v1992
      %v2104 = vpack.c.bf16 %v1998, %v1994
      %v2105 = vpack.c.bf16 %v2004, %v2000
      %v2106 = vpack.c.bf16 %v2006, %v2002
      %v2107 = vpack.c.bf16 %v2012, %v2008
      %v2108 = vpack.c.bf16 %v2014, %v2010
      %v2109 = vpack.c.bf16 %v2020, %v2016
      %v2110 = vpack.c.bf16 %v2022, %v2018
      %v2111 = vpack.c.bf16 %v2028, %v2024
      %v2112 = vpack.c.bf16 %v2030, %v2026
      %v2113 = vpack.c.bf16 %v2036, %v2032
      %v2114 = vpack.c.bf16 %v2038, %v2034
      %v2115 = vpack.c.bf16 %v2044, %v2040
      %v2116 = vpack.c.bf16 %v2046, %v2042
      %v2117 = vpack.c.bf16 %v2052, %v2048
      %v2118 = vpack.c.bf16 %v2054, %v2050
      %v2119 = vld [vmem:[#allocation3] sm:$0xff]
      %v2120 = vld [vmem:[#allocation3 + $0x8] sm:$0xff]
      %v2121 = vld [vmem:[#allocation3 + $0x10] sm:$0xff]
      %v2122 = vld [vmem:[#allocation3 + $0x18] sm:$0xff]
      %v2123 = vld [vmem:[#allocation3 + $0x20] sm:$0xff]
      %v2124 = vld [vmem:[#allocation3 + $0x28] sm:$0xff]
      %v2125 = vld [vmem:[#allocation3 + $0x30] sm:$0xff]
      %v2126 = vld [vmem:[#allocation3 + $0x38] sm:$0xff]
      %v2127 = vld [vmem:[#allocation3 + $0x40] sm:$0xff]
      %v2128 = vld [vmem:[#allocation3 + $0x48] sm:$0xff]
      %v2129 = vld [vmem:[#allocation3 + $0x50] sm:$0xff]
      %v2130 = vld [vmem:[#allocation3 + $0x58] sm:$0xff]
      %v2131 = vld [vmem:[#allocation3 + $0x60] sm:$0xff]
      %v2132 = vld [vmem:[#allocation3 + $0x68] sm:$0xff]
      %v2133 = vld [vmem:[#allocation3 + $0x70] sm:$0xff]
      %v2134 = vld [vmem:[#allocation3 + $0x78] sm:$0xff]
      %2135 = vmatprep.subr.bf16.mxu0 0
      %2136 = vmatpush1.bf16.msra.mxu0 %v2119
      %2137 = vmatprep.subr.bf16.mxu0 0
      %2138 = vmatpush1.bf16.msra.mxu0 %v2120
      %2139 = vmatprep.subr.bf16.mxu0 0
      %2140 = vmatpush1.bf16.msra.mxu0 %v2121
      %2141 = vmatprep.subr.bf16.mxu0 0
      %2142 = vmatpush1.bf16.msra.mxu0 %v2122
      %2143 = vmatprep.subr.bf16.mxu0 0
      %2144 = vmatpush1.bf16.msra.mxu0 %v2123
      %2145 = vmatprep.subr.bf16.mxu0 0
      %2146 = vmatpush1.bf16.msra.mxu0 %v2124
      %2147 = vmatprep.subr.bf16.mxu0 0
      %2148 = vmatpush1.bf16.msra.mxu0 %v2125
      %2149 = vmatprep.subr.bf16.mxu0 0
      %2150 = vmatpush1.bf16.msra.mxu0 %v2126
      %2151 = vmatprep.subr.bf16.mxu0 0
      %2152 = vmatpush1.bf16.msra.mxu0 %v2127
      %2153 = vmatprep.subr.bf16.mxu0 0
      %2154 = vmatpush1.bf16.msra.mxu0 %v2128
      %2155 = vmatprep.subr.bf16.mxu0 0
      %2156 = vmatpush1.bf16.msra.mxu0 %v2129
      %2157 = vmatprep.subr.bf16.mxu0 0
      %2158 = vmatpush1.bf16.msra.mxu0 %v2130
      %2159 = vmatprep.subr.bf16.mxu0 0
      %2160 = vmatpush1.bf16.msra.mxu0 %v2131
      %2161 = vmatprep.subr.bf16.mxu0 0
      %2162 = vmatpush1.bf16.msra.mxu0 %v2132
      %2163 = vmatprep.subr.bf16.mxu0 0
      %2164 = vmatpush1.bf16.msra.mxu0 %v2133
      %2165 = vmatprep.subr.bf16.mxu0 0
      %2166 = vmatpush1.bf16.msra.mxu0 %v2134
      %2167 = vmatprep.mubr.bf16.mxu0 %v2104
      %2168 = vmatmul.mubr.bf16.gmra.mrb[0].mxu0 %v2103
      %v2169 = vpop.f32.mrb[0].mxu0
      %v2170 = vadd.f32 0.0, %v2169
      %v2171 = vpop.f32.mrb[0].mxu0
      %v2172 = vpop.f32.mrb[0].mxu0
      %v2173 = vadd.f32 0.0, %v2172
      %v2174 = vpop.f32.mrb[0].mxu0
      %2175 = vmatprep.mubr.bf16.mxu0 %v2106
      %2176 = vmatmul.mubr.bf16.gmra.mrb[0].mxu0 %v2105
      %v2177 = vpop.f32.mrb[0].mxu0
      %v2178 = vadd.f32 0.0, %v2177
      %v2179 = vpop.f32.mrb[0].mxu0
      %v2180 = vpop.f32.mrb[0].mxu0
      %v2181 = vadd.f32 0.0, %v2180
      %v2182 = vpop.f32.mrb[0].mxu0
      %2183 = vmatprep.mubr.bf16.mxu0 %v2108
      %2184 = vmatmul.mubr.bf16.gmra.mrb[0].mxu0 %v2107
      %v2185 = vpop.f32.mrb[0].mxu0
      %v2186 = vadd.f32 0.0, %v2185
      %v2187 = vpop.f32.mrb[0].mxu0
      %v2188 = vpop.f32.mrb[0].mxu0
      %v2189 = vadd.f32 0.0, %v2188
      %v2190 = vpop.f32.mrb[0].mxu0
      %2191 = vmatprep.mubr.bf16.mxu0 %v2110
      %2192 = vmatmul.mubr.bf16.gmra.mrb[0].mxu0 %v2109
      %v2193 = vpop.f32.mrb[0].mxu0
      %v2194 = vadd.f32 0.0, %v2193
      %v2195 = vpop.f32.mrb[0].mxu0
      %v2196 = vpop.f32.mrb[0].mxu0
      %v2197 = vadd.f32 0.0, %v2196
      %v2198 = vpop.f32.mrb[0].mxu0
      %2199 = vmatprep.mubr.bf16.mxu0 %v2112
      %2200 = vmatmul.mubr.bf16.gmra.mrb[0].mxu0 %v2111
      %v2201 = vpop.f32.mrb[0].mxu0
      %v2202 = vadd.f32 0.0, %v2201
      %v2203 = vpop.f32.mrb[0].mxu0
      %v2204 = vpop.f32.mrb[0].mxu0
      %v2205 = vadd.f32 0.0, %v2204
      %v2206 = vpop.f32.mrb[0].mxu0
      %2207 = vmatprep.mubr.bf16.mxu0 %v2114
      %2208 = vmatmul.mubr.bf16.gmra.mrb[0].mxu0 %v2113
      %v2209 = vpop.f32.mrb[0].mxu0
      %v2210 = vadd.f32 0.0, %v2209
      %v2211 = vpop.f32.mrb[0].mxu0
      %v2212 = vpop.f32.mrb[0].mxu0
      %v2213 = vadd.f32 0.0, %v2212
      %v2214 = vpop.f32.mrb[0].mxu0
      %2215 = vmatprep.mubr.bf16.mxu0 %v2116
      %2216 = vmatmul.mubr.bf16.gmra.mrb[0].mxu0 %v2115
      %v2217 = vpop.f32.mrb[0].mxu0
      %v2218 = vadd.f32 0.0, %v2217
      %v2219 = vpop.f32.mrb[0].mxu0
      %v2220 = vpop.f32.mrb[0].mxu0
      %v2221 = vadd.f32 0.0, %v2220
      %v2222 = vpop.f32.mrb[0].mxu0
      %2223 = vmatprep.mubr.bf16.mxu0 %v2118
      %2224 = vmatmul.mubr.bf16.gmra.mrb[0].mxu0 %v2117
      %v2225 = vpop.f32.mrb[0].mxu0
      %v2226 = vadd.f32 0.0, %v2225
      %v2227 = vpop.f32.mrb[0].mxu0
      %v2228 = vpop.f32.mrb[0].mxu0
      %v2229 = vadd.f32 0.0, %v2228
      %v2230 = vpop.f32.mrb[0].mxu0
      %2231 = vdwg.mxu0
      %v2232 = vrcp.pop %v2057
      %v2233 = vrcp.pop %v2060
      %v2234 = vrcp.pop %v2063
      %v2235 = vrcp.pop %v2066
      %v2236 = vrcp.pop %v2069
      %v2237 = vrcp.pop %v2072
      %v2238 = vrcp.pop %v2075
      %v2239 = vrcp.pop %v2078
      %v2240 = vrcp.pop %v2081
      %v2241 = vrcp.pop %v2084
      %v2242 = vrcp.pop %v2087
      %v2243 = vrcp.pop %v2090
      %v2244 = vrcp.pop %v2093
      %v2245 = vrcp.pop %v2096
      %v2246 = vrcp.pop %v2099
      %v2247 = vrcp.pop %v2102
      %v2248 = vmul.f32 %v2170, %v2232
      %v2249 = vmul.f32 %v2173, %v2233
      %v2250 = vmul.f32 %v2178, %v2234
      %v2251 = vmul.f32 %v2181, %v2235
      %v2252 = vmul.f32 %v2186, %v2236
      %v2253 = vmul.f32 %v2189, %v2237
      %v2254 = vmul.f32 %v2194, %v2238
      %v2255 = vmul.f32 %v2197, %v2239
      %v2256 = vmul.f32 %v2202, %v2240
      %v2257 = vmul.f32 %v2205, %v2241
      %v2258 = vmul.f32 %v2210, %v2242
      %v2259 = vmul.f32 %v2213, %v2243
      %v2260 = vmul.f32 %v2218, %v2244
      %v2261 = vmul.f32 %v2221, %v2245
      %v2262 = vmul.f32 %v2226, %v2246
      %v2263 = vmul.f32 %v2229, %v2247
      %v2264 = vpack.c.bf16 %v2249, %v2248
      %v2265 = vpack.c.bf16 %v2251, %v2250
      %v2266 = vpack.c.bf16 %v2253, %v2252
      %v2267 = vpack.c.bf16 %v2255, %v2254
      %v2268 = vpack.c.bf16 %v2257, %v2256
      %v2269 = vpack.c.bf16 %v2259, %v2258
      %v2270 = vpack.c.bf16 %v2261, %v2260
      %v2271 = vpack.c.bf16 %v2263, %v2262
      %v2272 = vld [vmem:[%s10] sm:$0xf]
      %v2273 = vld [vmem:[%s10 + $0x4] sm:$0xf]
      %v2274 = vld [vmem:[%s10 + $0x8] sm:$0xf]
      %v2275 = vld [vmem:[%s10 + $0xc] sm:$0xf]
      %v2276 = vld [vmem:[%s10 + $0x10] sm:$0xf]
      %v2277 = vld [vmem:[%s10 + $0x14] sm:$0xf]
      %v2278 = vld [vmem:[%s10 + $0x18] sm:$0xf]
      %v2279 = vld [vmem:[%s10 + $0x1c] sm:$0xf]
      %v2280 = vld [vmem:[%s11] sm:$0x1]
      %v2282 = vlaneseq
      %v2283 = vshrl.u32 %v2282, 7
      %v2284 = vsub.s32 0, %v2283
      %v2285 = vrot.slane %v2280, %v2284
      %v2295 = vunpack.c.l.b16 %v2272
      %v2296 = vunpack.c.l.b16 %v2273
      %v2297 = vunpack.c.l.b16 %v2274
      %v2298 = vunpack.c.l.b16 %v2275
      %v2299 = vunpack.c.l.b16 %v2276
      %v2300 = vunpack.c.l.b16 %v2277
      %v2301 = vunpack.c.l.b16 %v2278
      %v2302 = vunpack.c.l.b16 %v2279
      %v2303 = vpack.c.b16 %v2296, %v2295
      %v2304 = vpack.c.b16 %v2298, %v2297
      %v2305 = vpack.c.b16 %v2300, %v2299
      %v2306 = vpack.c.b16 %v2302, %v2301
      %v2312 = vsel %vm1580, %v2264, 0
      %v2315 = vsel %vm1580, %v2265, 0
      %v2318 = vsel %vm1580, %v2266, 0
      %v2321 = vsel %vm1580, %v2267, 0
      %v2324 = vsel %vm1580, %v2268, 0
      %v2327 = vsel %vm1580, %v2269, 0
      %v2330 = vsel %vm1580, %v2270, 0
      %v2333 = vsel %vm1580, %v2271, 0
      %2335 = vmatprep.subr.bf16.mxu0 0
      %2336 = vmatpush1.bf16.msra.mxu0 %v2303
      %2337 = vmatprep.subr.bf16.mxu0 0
      %2338 = vmatpush1.bf16.msra.mxu0 %v2304
      %2339 = vmatprep.subr.bf16.mxu0 0
      %2340 = vmatpush1.bf16.msra.mxu0 %v2305
      %2341 = vmatprep.subr.bf16.mxu0 0
      %2342 = vmatpush1.bf16.msra.mxu0 %v2306
      %2343 = vmatprep.subr.bf16.mxu0 0
      %2344 = vmatpush1.bf16.msra.mxu0 0
      %2345 = vmatprep.subr.bf16.mxu0 0
      %2346 = vmatpush1.bf16.msra.mxu0 0
      %2347 = vmatprep.subr.bf16.mxu0 0
      %2348 = vmatpush1.bf16.msra.mxu0 0
      %2349 = vmatprep.subr.bf16.mxu0 0
      %2350 = vmatpush1.bf16.msra.mxu0 0
      %2351 = vmatprep.subr.bf16.mxu0 0
      %2352 = vmatpush1.bf16.msra.mxu0 0
      %2353 = vmatprep.subr.bf16.mxu0 0
      %2354 = vmatpush1.bf16.msra.mxu0 0
      %2355 = vmatprep.subr.bf16.mxu0 0
      %2356 = vmatpush1.bf16.msra.mxu0 0
      %2357 = vmatprep.subr.bf16.mxu0 0
      %2358 = vmatpush1.bf16.msra.mxu0 0
      %2359 = vmatprep.subr.bf16.mxu0 0
      %2360 = vmatpush1.bf16.msra.mxu0 0
      %2361 = vmatprep.subr.bf16.mxu0 0
      %2362 = vmatpush1.bf16.msra.mxu0 0
      %2363 = vmatprep.subr.bf16.mxu0 0
      %2364 = vmatpush1.bf16.msra.mxu0 0
      %2365 = vmatprep.subr.bf16.mxu0 0
      %2366 = vmatpush1.bf16.msra.mxu0 0
      %2367 = vmatprep.mubr.bf16.mxu0 0
      %2368 = vmatmul.mubr.bf16.gmra.mrb[0].mxu0 %v2312
      %v2369 = vpop.f32.mrb[0].mxu0
      %v2370 = vadd.f32 %v2285, %v2369
      %v2371 = vpop.f32.mrb[0].mxu0
      %v2372 = vpop.f32.mrb[0].mxu0
      %v2373 = vadd.f32 %v2285, %v2372
      %v2374 = vpop.f32.mrb[0].mxu0
      %2375 = vmatprep.mubr.bf16.mxu0 0
      %2376 = vmatmul.mubr.bf16.gmra.mrb[0].mxu0 %v2315
      %v2377 = vpop.f32.mrb[0].mxu0
      %v2378 = vadd.f32 %v2285, %v2377
      %v2379 = vpop.f32.mrb[0].mxu0
      %v2380 = vpop.f32.mrb[0].mxu0
      %v2381 = vadd.f32 %v2285, %v2380
      %v2382 = vpop.f32.mrb[0].mxu0
      %2383 = vmatprep.mubr.bf16.mxu0 0
      %2384 = vmatmul.mubr.bf16.gmra.mrb[0].mxu0 %v2318
      %v2385 = vpop.f32.mrb[0].mxu0
      %v2386 = vadd.f32 %v2285, %v2385
      %v2387 = vpop.f32.mrb[0].mxu0
      %v2388 = vpop.f32.mrb[0].mxu0
      %v2389 = vadd.f32 %v2285, %v2388
      %v2390 = vpop.f32.mrb[0].mxu0
      %2391 = vmatprep.mubr.bf16.mxu0 0
      %2392 = vmatmul.mubr.bf16.gmra.mrb[0].mxu0 %v2321
      %v2393 = vpop.f32.mrb[0].mxu0
      %v2394 = vadd.f32 %v2285, %v2393
      %v2395 = vpop.f32.mrb[0].mxu0
      %v2396 = vpop.f32.mrb[0].mxu0
      %v2397 = vadd.f32 %v2285, %v2396
      %v2398 = vpop.f32.mrb[0].mxu0
      %2399 = vmatprep.mubr.bf16.mxu0 0
      %2400 = vmatmul.mubr.bf16.gmra.mrb[0].mxu0 %v2324
      %v2401 = vpop.f32.mrb[0].mxu0
      %v2402 = vadd.f32 %v2285, %v2401
      %v2403 = vpop.f32.mrb[0].mxu0
      %v2404 = vpop.f32.mrb[0].mxu0
      %v2405 = vadd.f32 %v2285, %v2404
      %v2406 = vpop.f32.mrb[0].mxu0
      %2407 = vmatprep.mubr.bf16.mxu0 0
      %2408 = vmatmul.mubr.bf16.gmra.mrb[0].mxu0 %v2327
      %v2409 = vpop.f32.mrb[0].mxu0
      %v2410 = vadd.f32 %v2285, %v2409
      %v2411 = vpop.f32.mrb[0].mxu0
      %v2412 = vpop.f32.mrb[0].mxu0
      %v2413 = vadd.f32 %v2285, %v2412
      %v2414 = vpop.f32.mrb[0].mxu0
      %2415 = vmatprep.mubr.bf16.mxu0 0
      %2416 = vmatmul.mubr.bf16.gmra.mrb[0].mxu0 %v2330
      %v2417 = vpop.f32.mrb[0].mxu0
      %v2418 = vadd.f32 %v2285, %v2417
      %v2419 = vpop.f32.mrb[0].mxu0
      %v2420 = vpop.f32.mrb[0].mxu0
      %v2421 = vadd.f32 %v2285, %v2420
      %v2422 = vpop.f32.mrb[0].mxu0
      %2423 = vmatprep.mubr.bf16.mxu0 0
      %2424 = vmatmul.mubr.bf16.gmra.mrb[0].mxu0 %v2333
      %v2425 = vpop.f32.mrb[0].mxu0
      %v2426 = vadd.f32 %v2285, %v2425
      %v2427 = vpop.f32.mrb[0].mxu0
      %v2428 = vpop.f32.mrb[0].mxu0
      %v2429 = vadd.f32 %v2285, %v2428
      %v2430 = vpop.f32.mrb[0].mxu0
      %2431 = vdwg.mxu0
      %v2432 = vadd.f32 %v1446, %v2370
      %v2433 = vadd.f32 %v1447, %v2373
      %v2434 = vadd.f32 %v1448, %v2378
      %v2435 = vadd.f32 %v1449, %v2381
      %v2436 = vadd.f32 %v1450, %v2386
      %v2437 = vadd.f32 %v1451, %v2389
      %v2438 = vadd.f32 %v1452, %v2394
      %v2439 = vadd.f32 %v1453, %v2397
      %v2440 = vadd.f32 %v1454, %v2402
      %v2441 = vadd.f32 %v1455, %v2405
      %v2442 = vadd.f32 %v1456, %v2410
      %v2443 = vadd.f32 %v1457, %v2413
      %v2444 = vadd.f32 %v1458, %v2418
      %v2445 = vadd.f32 %v1459, %v2421
      %v2446 = vadd.f32 %v1460, %v2426
      %v2447 = vadd.f32 %v1461, %v2429
      %2448 = vst.msk [vmem:[%s435] sm:$0xff] %vm1580, %v2432
      %2449 = vst.msk [vmem:[%s435 + $0x8] sm:$0xff] %vm1580, %v2433
      %2450 = vst.msk [vmem:[%s435 + $0x10] sm:$0xff] %vm1580, %v2434
      %2451 = vst.msk [vmem:[%s435 + $0x18] sm:$0xff] %vm1580, %v2435
      %2452 = vst.msk [vmem:[%s435 + $0x20] sm:$0xff] %vm1580, %v2436
      %2453 = vst.msk [vmem:[%s435 + $0x28] sm:$0xff] %vm1580, %v2437
      %2454 = vst.msk [vmem:[%s435 + $0x30] sm:$0xff] %vm1580, %v2438
      %2455 = vst.msk [vmem:[%s435 + $0x38] sm:$0xff] %vm1580, %v2439
      %2456 = vst.msk [vmem:[%s435 + $0x40] sm:$0xff] %vm1580, %v2440
      %2457 = vst.msk [vmem:[%s435 + $0x48] sm:$0xff] %vm1580, %v2441
      %2458 = vst.msk [vmem:[%s435 + $0x50] sm:$0xff] %vm1580, %v2442
      %2459 = vst.msk [vmem:[%s435 + $0x58] sm:$0xff] %vm1580, %v2443
      %2460 = vst.msk [vmem:[%s435 + $0x60] sm:$0xff] %vm1580, %v2444
      %2461 = vst.msk [vmem:[%s435 + $0x68] sm:$0xff] %vm1580, %v2445
      %2462 = vst.msk [vmem:[%s435 + $0x70] sm:$0xff] %vm1580, %v2446
      %2463 = vst.msk [vmem:[%s435 + $0x78] sm:$0xff] %vm1580, %v2447
      %s2464 = smul.u32 16, %s28
      %p2465 = scmp.lt.s32.totalorder %s27, 1
      %s2466 = scalar_select %p2465, %s27, 1
      %p2467 = scmp.lt.s32.totalorder %s2464, 31
      %s2468 = scalar_select %p2467, %s2464, 31
      %s2469 = smul.addr %s2466, 32
      %s2470 = sadd.s32 %s2468, %s2469
      %s2471 = smul.addr %s2470, 8
      %s2472 = scalar_lea.vmem %s12, %s2471
      // Predicated region
      $region73: #{tpu_custom_call.1} parent=67 // pred_check
        %p2473 = pneg %p312
      $region74: #{tpu_custom_call.1} parent=67 // pred_check_branch
        %2475 = sbr.rel (%p2473) target = $region76
      $region75: #{tpu_custom_call.1} parent=67 // pred_region
        %s2476 = smul.u32 16, %s28
      $region76: #{tpu_custom_call.1} parent=67 // pred_fallthru
        _
    $region68: #{tpu_custom_call.1} parent=5 // pred_fallthru
      _
    %p2477 = scmp.le.s32.totalorder 2, %s18
    // Predicated region
    $region77: #{tpu_custom_call.1} parent=5 // pred_check
      %p2478 = pneg %p2477
    $region78: #{tpu_custom_call.1} parent=5 // pred_check_branch
      %2480 = sbr.rel (%p2478) target = $region80
    $region79: #{tpu_custom_call.1} parent=5 // pred_region
      %s2481 = ssub.s32 %s18, 2
      // Predicated region
      $region81: #{tpu_custom_call.1} parent=79 // pred_check
        %p2482 = pneg %p318
      $region82: #{tpu_custom_call.1} parent=79 // pred_check_branch
        %2484 = sbr.rel (%p2482) target = $region84
      $region83: #{tpu_custom_call.1} parent=79 // pred_region
        %s2485 = smul.u32 16, %s30
        %p2486 = scmp.lt.s32.totalorder %s29, 1
        %s2487 = scalar_select %p2486, %s29, 1
        %p2488 = scmp.lt.s32.totalorder %s2485, 31
        %s2489 = scalar_select %p2488, %s2485, 31
        %s2490 = smul.addr %s2487, 32
        %s2491 = sadd.s32 %s2489, %s2490
        %s2492 = smul.addr %s2491, 8
        %s2493 = scalar_lea.vmem %s12, %s2492
      $region84: #{tpu_custom_call.1} parent=79 // pred_fallthru
        _
    $region80: #{tpu_custom_call.1} parent=5 // pred_fallthru
      _
  $region6: #{tpu_custom_call.1} parent=0 // loop_footer
    %s22 = sadd.s32 1, %s18
  $region7: #{tpu_custom_call.1} parent=0 // loop_footer_branch
    %17 = sbr.rel target = $region3
  $region8: #{tpu_custom_call.1} parent=0 // loop_exit
    _

</llo_original>
